<compile_context>
chip_gen: v6e
topology: v6e:2x2x1
jax: 0.10.0
libtpu: 0.0.40
codegen_flags: <defaults>
</compile_context>

<pallas_src>
import functools
import math

import jax
import jax.numpy as jnp
from jax.experimental import pallas as pl
from jax.experimental.pallas import tpu as pltpu


# --------------------------- fused encoder-layer kernel ----------------------

def _encoder_layer_kernel(x_ref, bias_ref,
                          in_w_ref, in_b_ref, out_w_ref, out_b_ref,
                          ln1_g_ref, ln1_b_ref,
                          ff1_w_ref, ff1_b_ref, ff2_w_ref, ff2_b_ref,
                          ln2_g_ref, ln2_b_ref,
                          o_ref, *, n_head, eps):
    f32 = jnp.float32
    bf16 = jnp.bfloat16

    x = x_ref[0]                                   # (T, D) f32 residual stream
    T, D = x.shape
    dh = D // n_head
    scale = 1.0 / math.sqrt(dh)

    xb = x.astype(bf16)

    # ---- QKV projection: one lane-dense matmul (T, D) @ (D, 3D) on the MXU.
    # in_w is kept in nn.Linear (3D, D) layout; contract on its last dim.
    qkv = jax.lax.dot_general(
        xb, in_w_ref[...], (((1,), (1,)), ((), ())),
        preferred_element_type=f32) + in_b_ref[...]            # (T, 3D) f32

    bias = bias_ref[0]                                          # (1, T) additive
    out_w = out_w_ref[...]                                      # (D, D) bf16

    # ---- per-head attention, with the output projection folded into the
    # per-head loop:  ao @ out_w.T == sum_h oh @ out_w[:, h-slice].T
    proj = jnp.zeros((T, D), f32)
    for h in range(n_head):
        lo = h * dh
        qh = qkv[:, 0 * D + lo: 0 * D + lo + dh].astype(bf16)   # (T, dh)
        kh = qkv[:, 1 * D + lo: 1 * D + lo + dh].astype(bf16)
        vh = qkv[:, 2 * D + lo: 2 * D + lo + dh].astype(bf16)

        # scores: (T, T) f32, T on the lane axis
        s = jax.lax.dot_general(qh, kh, (((1,), (1,)), ((), ())),
                                preferred_element_type=f32) * scale + bias
        m = jnp.max(s, axis=-1, keepdims=True)
        p = jnp.exp(s - m)
        denom = jnp.sum(p, axis=-1, keepdims=True)
        attn = (p * pl.reciprocal(denom, approx=True)).astype(bf16)

        oh = jnp.dot(attn, vh, preferred_element_type=f32)      # (T, dh)
        proj = proj + jax.lax.dot_general(
            oh.astype(bf16), out_w[:, lo:lo + dh],
            (((1,), (1,)), ((), ())), preferred_element_type=f32)  # (T, D)

    proj = proj + out_b_ref[...]

    # ---- residual add + LayerNorm 1 (f32 stats) ----
    s1 = x + proj
    mu1 = jnp.mean(s1, axis=-1, keepdims=True)
    var1 = jnp.mean(jnp.square(s1 - mu1), axis=-1, keepdims=True)
    x1 = (s1 - mu1) * jax.lax.rsqrt(var1 + eps) * ln1_g_ref[...] + ln1_b_ref[...]

    # ---- FFN: linear -> ReLU -> linear (bf16 matmuls, f32 accumulate) ----
    h1 = jax.lax.dot_general(
        x1.astype(bf16), ff1_w_ref[...], (((1,), (1,)), ((), ())),
        preferred_element_type=f32) + ff1_b_ref[...]            # (T, F)
    h1 = jnp.maximum(h1, 0.0).astype(bf16)
    ff = jax.lax.dot_general(
        h1, ff2_w_ref[...], (((1,), (1,)), ((), ())),
        preferred_element_type=f32) + ff2_b_ref[...]            # (T, D)

    # ---- residual add + LayerNorm 2 ----
    s2 = x1 + ff
    mu2 = jnp.mean(s2, axis=-1, keepdims=True)
    var2 = jnp.mean(jnp.square(s2 - mu2), axis=-1, keepdims=True)
    o_ref[0] = (s2 - mu2) * jax.lax.rsqrt(var2 + eps) * ln2_g_ref[...] + ln2_b_ref[...]


# --------------------------- wrapper ------------------------------------------

def pallas_encoder_layer(x, bias, lyr, *, n_head, eps=1e-5):
    """x: (B, T, D) f32; bias: (B, 1, T) f32 additive key-padding bias."""
    B, T, D = x.shape
    F = lyr["ff1_w"].shape[0]
    bf16 = jnp.bfloat16

    in_w = lyr["in_w"].astype(bf16)                 # (3D, D)  nn.Linear layout
    in_b = lyr["in_b"].reshape(1, -1)               # (1, 3D)  f32
    out_w = lyr["out_w"].astype(bf16)               # (D, D)
    out_b = lyr["out_b"].reshape(1, -1)             # (1, D)
    ff1_w = lyr["ff1_w"].astype(bf16)               # (F, D)
    ff1_b = lyr["ff1_b"].reshape(1, -1)             # (1, F)
    ff2_w = lyr["ff2_w"].astype(bf16)               # (D, F)
    ff2_b = lyr["ff2_b"].reshape(1, -1)             # (1, D)
    ln1_g = lyr["ln1_g"].reshape(1, -1)
    ln1_b = lyr["ln1_b"].reshape(1, -1)
    ln2_g = lyr["ln2_g"].reshape(1, -1)
    ln2_b = lyr["ln2_b"].reshape(1, -1)

    kern = functools.partial(_encoder_layer_kernel, n_head=n_head, eps=eps)

    def wspec(shape):
        # weight blocks: full array, same block for every grid step
        return pl.BlockSpec(shape, lambda b: (0, 0))

    xspec = pl.BlockSpec((1, T, D), lambda b: (b, 0, 0))
    bspec = pl.BlockSpec((1, 1, T), lambda b: (b, 0, 0))

    return pl.pallas_call(
        kern,
        out_shape=jax.ShapeDtypeStruct((B, T, D), jnp.float32),
        grid=(B,),
        in_specs=[
            xspec, bspec,
            wspec((3 * D, D)), wspec((1, 3 * D)),
            wspec((D, D)), wspec((1, D)),
            wspec((1, D)), wspec((1, D)),
            wspec((F, D)), wspec((1, F)),
            wspec((D, F)), wspec((1, D)),
            wspec((1, D)), wspec((1, D)),
        ],
        out_specs=pl.BlockSpec((1, T, D), lambda b: (b, 0, 0)),
        compiler_params=pltpu.CompilerParams(
            dimension_semantics=("parallel",),
            vmem_limit_bytes=64 * 1024 * 1024,
        ),
    )(x, bias, in_w, in_b, out_w, out_b, ln1_g, ln1_b,
      ff1_w, ff1_b, ff2_w, ff2_b, ln2_g, ln2_b)


# --------------------------- model (glue in plain JAX) ------------------------

def init_params(key, hidden_dim, n_pred, n_layer, d_ff):
    keys = jax.random.split(key, 2 + n_layer)
    params = {
        "pred_tokens": 0.02 * jax.random.normal(
            keys[0], (1, n_pred, hidden_dim), jnp.float32),
        "fc_w": 0.02 * jax.random.normal(keys[1], (1, hidden_dim), jnp.float32),
        "fc_b": jnp.zeros((1,), jnp.float32),
        "layers": [],
    }
    for l in range(n_layer):
        lk = jax.random.split(keys[2 + l], 4)
        params["layers"].append(dict(
            in_w=0.02 * jax.random.normal(lk[0], (3 * hidden_dim, hidden_dim), jnp.float32),
            in_b=jnp.zeros((3 * hidden_dim,), jnp.float32),
            out_w=0.02 * jax.random.normal(lk[1], (hidden_dim, hidden_dim), jnp.float32),
            out_b=jnp.zeros((hidden_dim,), jnp.float32),
            ln1_g=jnp.ones((hidden_dim,), jnp.float32),
            ln1_b=jnp.zeros((hidden_dim,), jnp.float32),
            ff1_w=0.02 * jax.random.normal(lk[2], (d_ff, hidden_dim), jnp.float32),
            ff1_b=jnp.zeros((d_ff,), jnp.float32),
            ff2_w=0.02 * jax.random.normal(lk[3], (hidden_dim, d_ff), jnp.float32),
            ff2_b=jnp.zeros((hidden_dim,), jnp.float32),
            ln2_g=jnp.ones((hidden_dim,), jnp.float32),
            ln2_b=jnp.zeros((hidden_dim,), jnp.float32),
        ))
    return params


def attn2_forward(params, smile_feat, mask, *, n_head):
    B, S, D = smile_feat.shape
    P = params["pred_tokens"].shape[1]
    T = P + S

    # prepend learnable prediction tokens
    x = jnp.concatenate(
        [jnp.broadcast_to(params["pred_tokens"], (B, P, D)), smile_feat], axis=1)

    # key_padding_mask: True = padded -> large negative additive bias
    key_pad = jnp.concatenate(
        [jnp.zeros((B, P), dtype=bool), mask.astype(bool)], axis=1)
    bias = jnp.where(key_pad, -1e30, 0.0).astype(jnp.float32).reshape(B, 1, T)

    # one fused Pallas kernel per encoder layer
    for lyr in params["layers"]:
        x = pallas_encoder_layer(x, bias, lyr, n_head=n_head)

    # prediction-token slice -> out_fc (output width 1: plain XLA, a Pallas
    # kernel with a 1-wide lane output would only pay masked-store penalties)
    pred_tok = x[:, :P, :]                                       # (B, P, D)
    out = jnp.einsum("bpd,d->bp", pred_tok, params["fc_w"][0]) + params["fc_b"][0]
    return out


if __name__ == "__main__":
    key = jax.random.PRNGKey(0)
    B, S = 2, 8
    hidden_dim = 32          # small analogue of 384, divisible by nhead=8
    n_head = 8
    n_layer = 2
    out_dim, out_dim2 = 3, 1
    n_pred = out_dim + out_dim2
    d_ff = 4 * hidden_dim

    k_feat, k_param = jax.random.split(key, 2)
    smile_feat = jax.random.normal(k_feat, (B, S, hidden_dim), jnp.float32)
    # True = padding (key_padding_mask convention); pad last 2 tokens of batch 1
    mask = jnp.zeros((B, S), dtype=bool).at[1, -2:].set(True)

    params = init_params(k_param, hidden_dim, n_pred, n_layer, d_ff)

    fwd = jax.jit(functools.partial(attn2_forward, n_head=n_head))
    out = fwd(params, smile_feat, mask)
    out = jax.block_until_ready(out)

    assert out.shape == (B, n_pred), out.shape
    assert bool(jnp.all(jnp.isfinite(out)))
    print("KERNEL_OK")
</pallas_src>

<mosaic_0001>
module attributes {stable_mosaic.version = 11 : i64} {
  func.func @_encoder_layer_kernel(%arg0: i32, %arg1: memref<1x12x32xf32, #tpu.memory_space<vmem>>, %arg2: memref<1x1x12xf32, #tpu.memory_space<vmem>>, %arg3: memref<96x32xbf16, #tpu.memory_space<vmem>>, %arg4: memref<1x96xf32, #tpu.memory_space<vmem>>, %arg5: memref<32x32xbf16, #tpu.memory_space<vmem>>, %arg6: memref<1x32xf32, #tpu.memory_space<vmem>>, %arg7: memref<1x32xf32, #tpu.memory_space<vmem>>, %arg8: memref<1x32xf32, #tpu.memory_space<vmem>>, %arg9: memref<128x32xbf16, #tpu.memory_space<vmem>>, %arg10: memref<1x128xf32, #tpu.memory_space<vmem>>, %arg11: memref<32x128xbf16, #tpu.memory_space<vmem>>, %arg12: memref<1x32xf32, #tpu.memory_space<vmem>>, %arg13: memref<1x32xf32, #tpu.memory_space<vmem>>, %arg14: memref<1x32xf32, #tpu.memory_space<vmem>>, %arg15: memref<1x12x32xf32, #tpu.memory_space<vmem>>) attributes {dimension_semantics = [#tpu.dimension_semantics<parallel>], iteration_bounds = array<i64: 2>, scalar_prefetch = 0 : i64, scratch_operands = 0 : i64, tpu.core_type = #tpu.core_type<tc>, window_params = [{transform_indices = @transform_0, window_bounds = array<i64: 1, 12, 32>}, {transform_indices = @transform_1, window_bounds = array<i64: 1, 1, 12>}, {pipeline_mode = #tpu.pipeline_mode<synchronous>, transform_indices = @transform_2, window_bounds = array<i64: 96, 32>}, {pipeline_mode = #tpu.pipeline_mode<synchronous>, transform_indices = @transform_3, window_bounds = array<i64: 1, 96>}, {pipeline_mode = #tpu.pipeline_mode<synchronous>, transform_indices = @transform_4, window_bounds = array<i64: 32, 32>}, {pipeline_mode = #tpu.pipeline_mode<synchronous>, transform_indices = @transform_5, window_bounds = array<i64: 1, 32>}, {pipeline_mode = #tpu.pipeline_mode<synchronous>, transform_indices = @transform_6, window_bounds = array<i64: 1, 32>}, {pipeline_mode = #tpu.pipeline_mode<synchronous>, transform_indices = @transform_7, window_bounds = array<i64: 1, 32>}, {pipeline_mode = #tpu.pipeline_mode<synchronous>, transform_indices = @transform_8, window_bounds = array<i64: 128, 32>}, {pipeline_mode = #tpu.pipeline_mode<synchronous>, transform_indices = @transform_9, window_bounds = array<i64: 1, 128>}, {pipeline_mode = #tpu.pipeline_mode<synchronous>, transform_indices = @transform_10, window_bounds = array<i64: 32, 128>}, {pipeline_mode = #tpu.pipeline_mode<synchronous>, transform_indices = @transform_11, window_bounds = array<i64: 1, 32>}, {pipeline_mode = #tpu.pipeline_mode<synchronous>, transform_indices = @transform_12, window_bounds = array<i64: 1, 32>}, {pipeline_mode = #tpu.pipeline_mode<synchronous>, transform_indices = @transform_13, window_bounds = array<i64: 1, 32>}, {transform_indices = @transform_14, window_bounds = array<i64: 1, 12, 32>}]} {
    %c0 = arith.constant 0 : index
    %c0_0 = arith.constant 0 : index
    %c0_1 = arith.constant 0 : index
    %0 = vector.load %arg1[%c0, %c0_0, %c0_1] : memref<1x12x32xf32, #tpu.memory_space<vmem>>, vector<1x12x32xf32>
    %1 = vector.shape_cast %0 : vector<1x12x32xf32> to vector<12x32xf32>
    %2 = arith.truncf %1 : vector<12x32xf32> to vector<12x32xbf16>
    %c0_2 = arith.constant 0 : index
    %c0_3 = arith.constant 0 : index
    %3 = vector.load %arg3[%c0_2, %c0_3] : memref<96x32xbf16, #tpu.memory_space<vmem>>, vector<96x32xbf16>
    %cst = arith.constant dense<0.000000e+00> : vector<12x96xf32>
    %4 = tpu.matmul %2, %3, %cst {dimension_numbers = #tpu.dot_dimension_numbers<[1], [1], [0], [0], [0, 0, 1, 0], [], []>} : vector<12x32xbf16>, vector<96x32xbf16>, vector<12x96xf32> -> vector<12x96xf32>
    %c0_4 = arith.constant 0 : index
    %c0_5 = arith.constant 0 : index
    %5 = vector.load %arg4[%c0_4, %c0_5] : memref<1x96xf32, #tpu.memory_space<vmem>>, vector<1x96xf32>
    %6 = vector.broadcast %5 : vector<1x96xf32> to vector<12x96xf32>
    %7 = arith.addf %4, %6 : vector<12x96xf32>
    %c0_6 = arith.constant 0 : index
    %c0_7 = arith.constant 0 : index
    %c0_8 = arith.constant 0 : index
    %8 = vector.load %arg2[%c0_6, %c0_7, %c0_8] : memref<1x1x12xf32, #tpu.memory_space<vmem>>, vector<1x1x12xf32>
    %9 = vector.shape_cast %8 : vector<1x1x12xf32> to vector<1x12xf32>
    %c0_9 = arith.constant 0 : index
    %c0_10 = arith.constant 0 : index
    %10 = vector.load %arg5[%c0_9, %c0_10] : memref<32x32xbf16, #tpu.memory_space<vmem>>, vector<32x32xbf16>
    %cst_11 = arith.constant 0.000000e+00 : f32
    %11 = vector.broadcast %cst_11 : f32 to vector<12x32xf32>
    %12 = vector.extract_strided_slice %7 {offsets = [0, 0], sizes = [12, 4], strides = [1, 1]} : vector<12x96xf32> to vector<12x4xf32>
    %13 = arith.truncf %12 : vector<12x4xf32> to vector<12x4xbf16>
    %14 = vector.extract_strided_slice %7 {offsets = [0, 32], sizes = [12, 4], strides = [1, 1]} : vector<12x96xf32> to vector<12x4xf32>
    %15 = arith.truncf %14 : vector<12x4xf32> to vector<12x4xbf16>
    %16 = vector.extract_strided_slice %7 {offsets = [0, 64], sizes = [12, 4], strides = [1, 1]} : vector<12x96xf32> to vector<12x4xf32>
    %17 = arith.truncf %16 : vector<12x4xf32> to vector<12x4xbf16>
    %cst_12 = arith.constant dense<0.000000e+00> : vector<12x12xf32>
    %18 = tpu.matmul %13, %15, %cst_12 {dimension_numbers = #tpu.dot_dimension_numbers<[1], [1], [0], [0], [0, 0, 1, 0], [], []>} : vector<12x4xbf16>, vector<12x4xbf16>, vector<12x12xf32> -> vector<12x12xf32>
    %cst_13 = arith.constant 5.000000e-01 : f32
    %19 = vector.broadcast %cst_13 : f32 to vector<12x12xf32>
    %20 = arith.mulf %18, %19 : vector<12x12xf32>
    %21 = vector.broadcast %9 : vector<1x12xf32> to vector<12x12xf32>
    %22 = arith.addf %20, %21 : vector<12x12xf32>
    %cst_14 = arith.constant dense<0xFF800000> : vector<12xf32>
    %23 = vector.multi_reduction <maximumf>, %22, %cst_14 [1] : vector<12x12xf32> to vector<12xf32>
    %24 = vector.shape_cast %23 : vector<12xf32> to vector<12x1xf32>
    %25 = vector.broadcast %24 : vector<12x1xf32> to vector<12x12xf32>
    %26 = arith.subf %22, %25 : vector<12x12xf32>
    %27 = math.exp %26 : vector<12x12xf32>
    %cst_15 = arith.constant dense<0.000000e+00> : vector<12xf32>
    %28 = vector.multi_reduction <add>, %27, %cst_15 [1] : vector<12x12xf32> to vector<12xf32>
    %29 = vector.shape_cast %28 : vector<12xf32> to vector<12x1xf32>
    %30 = tpu.reciprocal %29 {approx = true} : vector<12x1xf32> -> vector<12x1xf32>
    %31 = vector.broadcast %30 : vector<12x1xf32> to vector<12x12xf32>
    %32 = arith.mulf %27, %31 : vector<12x12xf32>
    %33 = arith.truncf %32 : vector<12x12xf32> to vector<12x12xbf16>
    %cst_16 = arith.constant dense<0.000000e+00> : vector<12x4xf32>
    %34 = tpu.matmul %33, %17, %cst_16 {dimension_numbers = #tpu.dot_dimension_numbers<[1], [0], [0], [1], [0, 0, 1, 1], [], []>} : vector<12x12xbf16>, vector<12x4xbf16>, vector<12x4xf32> -> vector<12x4xf32>
    %35 = arith.truncf %34 : vector<12x4xf32> to vector<12x4xbf16>
    %36 = vector.extract_strided_slice %10 {offsets = [0, 0], sizes = [32, 4], strides = [1, 1]} : vector<32x32xbf16> to vector<32x4xbf16>
    %cst_17 = arith.constant dense<0.000000e+00> : vector<12x32xf32>
    %37 = tpu.matmul %35, %36, %cst_17 {dimension_numbers = #tpu.dot_dimension_numbers<[1], [1], [0], [0], [0, 0, 1, 0], [], []>} : vector<12x4xbf16>, vector<32x4xbf16>, vector<12x32xf32> -> vector<12x32xf32>
    %38 = arith.addf %11, %37 : vector<12x32xf32>
    %39 = vector.extract_strided_slice %7 {offsets = [0, 4], sizes = [12, 4], strides = [1, 1]} : vector<12x96xf32> to vector<12x4xf32>
    %40 = arith.truncf %39 : vector<12x4xf32> to vector<12x4xbf16>
    %41 = vector.extract_strided_slice %7 {offsets = [0, 36], sizes = [12, 4], strides = [1, 1]} : vector<12x96xf32> to vector<12x4xf32>
    %42 = arith.truncf %41 : vector<12x4xf32> to vector<12x4xbf16>
    %43 = vector.extract_strided_slice %7 {offsets = [0, 68], sizes = [12, 4], strides = [1, 1]} : vector<12x96xf32> to vector<12x4xf32>
    %44 = arith.truncf %43 : vector<12x4xf32> to vector<12x4xbf16>
    %cst_18 = arith.constant dense<0.000000e+00> : vector<12x12xf32>
    %45 = tpu.matmul %40, %42, %cst_18 {dimension_numbers = #tpu.dot_dimension_numbers<[1], [1], [0], [0], [0, 0, 1, 0], [], []>} : vector<12x4xbf16>, vector<12x4xbf16>, vector<12x12xf32> -> vector<12x12xf32>
    %cst_19 = arith.constant 5.000000e-01 : f32
    %46 = vector.broadcast %cst_19 : f32 to vector<12x12xf32>
    %47 = arith.mulf %45, %46 : vector<12x12xf32>
    %48 = vector.broadcast %9 : vector<1x12xf32> to vector<12x12xf32>
    %49 = arith.addf %47, %48 : vector<12x12xf32>
    %cst_20 = arith.constant dense<0xFF800000> : vector<12xf32>
    %50 = vector.multi_reduction <maximumf>, %49, %cst_20 [1] : vector<12x12xf32> to vector<12xf32>
    %51 = vector.shape_cast %50 : vector<12xf32> to vector<12x1xf32>
    %52 = vector.broadcast %51 : vector<12x1xf32> to vector<12x12xf32>
    %53 = arith.subf %49, %52 : vector<12x12xf32>
    %54 = math.exp %53 : vector<12x12xf32>
    %cst_21 = arith.constant dense<0.000000e+00> : vector<12xf32>
    %55 = vector.multi_reduction <add>, %54, %cst_21 [1] : vector<12x12xf32> to vector<12xf32>
    %56 = vector.shape_cast %55 : vector<12xf32> to vector<12x1xf32>
    %57 = tpu.reciprocal %56 {approx = true} : vector<12x1xf32> -> vector<12x1xf32>
    %58 = vector.broadcast %57 : vector<12x1xf32> to vector<12x12xf32>
    %59 = arith.mulf %54, %58 : vector<12x12xf32>
    %60 = arith.truncf %59 : vector<12x12xf32> to vector<12x12xbf16>
    %cst_22 = arith.constant dense<0.000000e+00> : vector<12x4xf32>
    %61 = tpu.matmul %60, %44, %cst_22 {dimension_numbers = #tpu.dot_dimension_numbers<[1], [0], [0], [1], [0, 0, 1, 1], [], []>} : vector<12x12xbf16>, vector<12x4xbf16>, vector<12x4xf32> -> vector<12x4xf32>
    %62 = arith.truncf %61 : vector<12x4xf32> to vector<12x4xbf16>
    %63 = vector.extract_strided_slice %10 {offsets = [0, 4], sizes = [32, 4], strides = [1, 1]} : vector<32x32xbf16> to vector<32x4xbf16>
    %cst_23 = arith.constant dense<0.000000e+00> : vector<12x32xf32>
    %64 = tpu.matmul %62, %63, %cst_23 {dimension_numbers = #tpu.dot_dimension_numbers<[1], [1], [0], [0], [0, 0, 1, 0], [], []>} : vector<12x4xbf16>, vector<32x4xbf16>, vector<12x32xf32> -> vector<12x32xf32>
    %65 = arith.addf %38, %64 : vector<12x32xf32>
    %66 = vector.extract_strided_slice %7 {offsets = [0, 8], sizes = [12, 4], strides = [1, 1]} : vector<12x96xf32> to vector<12x4xf32>
    %67 = arith.truncf %66 : vector<12x4xf32> to vector<12x4xbf16>
    %68 = vector.extract_strided_slice %7 {offsets = [0, 40], sizes = [12, 4], strides = [1, 1]} : vector<12x96xf32> to vector<12x4xf32>
    %69 = arith.truncf %68 : vector<12x4xf32> to vector<12x4xbf16>
    %70 = vector.extract_strided_slice %7 {offsets = [0, 72], sizes = [12, 4], strides = [1, 1]} : vector<12x96xf32> to vector<12x4xf32>
    %71 = arith.truncf %70 : vector<12x4xf32> to vector<12x4xbf16>
    %cst_24 = arith.constant dense<0.000000e+00> : vector<12x12xf32>
    %72 = tpu.matmul %67, %69, %cst_24 {dimension_numbers = #tpu.dot_dimension_numbers<[1], [1], [0], [0], [0, 0, 1, 0], [], []>} : vector<12x4xbf16>, vector<12x4xbf16>, vector<12x12xf32> -> vector<12x12xf32>
    %cst_25 = arith.constant 5.000000e-01 : f32
    %73 = vector.broadcast %cst_25 : f32 to vector<12x12xf32>
    %74 = arith.mulf %72, %73 : vector<12x12xf32>
    %75 = vector.broadcast %9 : vector<1x12xf32> to vector<12x12xf32>
    %76 = arith.addf %74, %75 : vector<12x12xf32>
    %cst_26 = arith.constant dense<0xFF800000> : vector<12xf32>
    %77 = vector.multi_reduction <maximumf>, %76, %cst_26 [1] : vector<12x12xf32> to vector<12xf32>
    %78 = vector.shape_cast %77 : vector<12xf32> to vector<12x1xf32>
    %79 = vector.broadcast %78 : vector<12x1xf32> to vector<12x12xf32>
    %80 = arith.subf %76, %79 : vector<12x12xf32>
    %81 = math.exp %80 : vector<12x12xf32>
    %cst_27 = arith.constant dense<0.000000e+00> : vector<12xf32>
    %82 = vector.multi_reduction <add>, %81, %cst_27 [1] : vector<12x12xf32> to vector<12xf32>
    %83 = vector.shape_cast %82 : vector<12xf32> to vector<12x1xf32>
    %84 = tpu.reciprocal %83 {approx = true} : vector<12x1xf32> -> vector<12x1xf32>
    %85 = vector.broadcast %84 : vector<12x1xf32> to vector<12x12xf32>
    %86 = arith.mulf %81, %85 : vector<12x12xf32>
    %87 = arith.truncf %86 : vector<12x12xf32> to vector<12x12xbf16>
    %cst_28 = arith.constant dense<0.000000e+00> : vector<12x4xf32>
    %88 = tpu.matmul %87, %71, %cst_28 {dimension_numbers = #tpu.dot_dimension_numbers<[1], [0], [0], [1], [0, 0, 1, 1], [], []>} : vector<12x12xbf16>, vector<12x4xbf16>, vector<12x4xf32> -> vector<12x4xf32>
    %89 = arith.truncf %88 : vector<12x4xf32> to vector<12x4xbf16>
    %90 = vector.extract_strided_slice %10 {offsets = [0, 8], sizes = [32, 4], strides = [1, 1]} : vector<32x32xbf16> to vector<32x4xbf16>
    %cst_29 = arith.constant dense<0.000000e+00> : vector<12x32xf32>
    %91 = tpu.matmul %89, %90, %cst_29 {dimension_numbers = #tpu.dot_dimension_numbers<[1], [1], [0], [0], [0, 0, 1, 0], [], []>} : vector<12x4xbf16>, vector<32x4xbf16>, vector<12x32xf32> -> vector<12x32xf32>
    %92 = arith.addf %65, %91 : vector<12x32xf32>
    %93 = vector.extract_strided_slice %7 {offsets = [0, 12], sizes = [12, 4], strides = [1, 1]} : vector<12x96xf32> to vector<12x4xf32>
    %94 = arith.truncf %93 : vector<12x4xf32> to vector<12x4xbf16>
    %95 = vector.extract_strided_slice %7 {offsets = [0, 44], sizes = [12, 4], strides = [1, 1]} : vector<12x96xf32> to vector<12x4xf32>
    %96 = arith.truncf %95 : vector<12x4xf32> to vector<12x4xbf16>
    %97 = vector.extract_strided_slice %7 {offsets = [0, 76], sizes = [12, 4], strides = [1, 1]} : vector<12x96xf32> to vector<12x4xf32>
    %98 = arith.truncf %97 : vector<12x4xf32> to vector<12x4xbf16>
    %cst_30 = arith.constant dense<0.000000e+00> : vector<12x12xf32>
    %99 = tpu.matmul %94, %96, %cst_30 {dimension_numbers = #tpu.dot_dimension_numbers<[1], [1], [0], [0], [0, 0, 1, 0], [], []>} : vector<12x4xbf16>, vector<12x4xbf16>, vector<12x12xf32> -> vector<12x12xf32>
    %cst_31 = arith.constant 5.000000e-01 : f32
    %100 = vector.broadcast %cst_31 : f32 to vector<12x12xf32>
    %101 = arith.mulf %99, %100 : vector<12x12xf32>
    %102 = vector.broadcast %9 : vector<1x12xf32> to vector<12x12xf32>
    %103 = arith.addf %101, %102 : vector<12x12xf32>
    %cst_32 = arith.constant dense<0xFF800000> : vector<12xf32>
    %104 = vector.multi_reduction <maximumf>, %103, %cst_32 [1] : vector<12x12xf32> to vector<12xf32>
    %105 = vector.shape_cast %104 : vector<12xf32> to vector<12x1xf32>
    %106 = vector.broadcast %105 : vector<12x1xf32> to vector<12x12xf32>
    %107 = arith.subf %103, %106 : vector<12x12xf32>
    %108 = math.exp %107 : vector<12x12xf32>
    %cst_33 = arith.constant dense<0.000000e+00> : vector<12xf32>
    %109 = vector.multi_reduction <add>, %108, %cst_33 [1] : vector<12x12xf32> to vector<12xf32>
    %110 = vector.shape_cast %109 : vector<12xf32> to vector<12x1xf32>
    %111 = tpu.reciprocal %110 {approx = true} : vector<12x1xf32> -> vector<12x1xf32>
    %112 = vector.broadcast %111 : vector<12x1xf32> to vector<12x12xf32>
    %113 = arith.mulf %108, %112 : vector<12x12xf32>
    %114 = arith.truncf %113 : vector<12x12xf32> to vector<12x12xbf16>
    %cst_34 = arith.constant dense<0.000000e+00> : vector<12x4xf32>
    %115 = tpu.matmul %114, %98, %cst_34 {dimension_numbers = #tpu.dot_dimension_numbers<[1], [0], [0], [1], [0, 0, 1, 1], [], []>} : vector<12x12xbf16>, vector<12x4xbf16>, vector<12x4xf32> -> vector<12x4xf32>
    %116 = arith.truncf %115 : vector<12x4xf32> to vector<12x4xbf16>
    %117 = vector.extract_strided_slice %10 {offsets = [0, 12], sizes = [32, 4], strides = [1, 1]} : vector<32x32xbf16> to vector<32x4xbf16>
    %cst_35 = arith.constant dense<0.000000e+00> : vector<12x32xf32>
    %118 = tpu.matmul %116, %117, %cst_35 {dimension_numbers = #tpu.dot_dimension_numbers<[1], [1], [0], [0], [0, 0, 1, 0], [], []>} : vector<12x4xbf16>, vector<32x4xbf16>, vector<12x32xf32> -> vector<12x32xf32>
    %119 = arith.addf %92, %118 : vector<12x32xf32>
    %120 = vector.extract_strided_slice %7 {offsets = [0, 16], sizes = [12, 4], strides = [1, 1]} : vector<12x96xf32> to vector<12x4xf32>
    %121 = arith.truncf %120 : vector<12x4xf32> to vector<12x4xbf16>
    %122 = vector.extract_strided_slice %7 {offsets = [0, 48], sizes = [12, 4], strides = [1, 1]} : vector<12x96xf32> to vector<12x4xf32>
    %123 = arith.truncf %122 : vector<12x4xf32> to vector<12x4xbf16>
    %124 = vector.extract_strided_slice %7 {offsets = [0, 80], sizes = [12, 4], strides = [1, 1]} : vector<12x96xf32> to vector<12x4xf32>
    %125 = arith.truncf %124 : vector<12x4xf32> to vector<12x4xbf16>
    %cst_36 = arith.constant dense<0.000000e+00> : vector<12x12xf32>
    %126 = tpu.matmul %121, %123, %cst_36 {dimension_numbers = #tpu.dot_dimension_numbers<[1], [1], [0], [0], [0, 0, 1, 0], [], []>} : vector<12x4xbf16>, vector<12x4xbf16>, vector<12x12xf32> -> vector<12x12xf32>
    %cst_37 = arith.constant 5.000000e-01 : f32
    %127 = vector.broadcast %cst_37 : f32 to vector<12x12xf32>
    %128 = arith.mulf %126, %127 : vector<12x12xf32>
    %129 = vector.broadcast %9 : vector<1x12xf32> to vector<12x12xf32>
    %130 = arith.addf %128, %129 : vector<12x12xf32>
    %cst_38 = arith.constant dense<0xFF800000> : vector<12xf32>
    %131 = vector.multi_reduction <maximumf>, %130, %cst_38 [1] : vector<12x12xf32> to vector<12xf32>
    %132 = vector.shape_cast %131 : vector<12xf32> to vector<12x1xf32>
    %133 = vector.broadcast %132 : vector<12x1xf32> to vector<12x12xf32>
    %134 = arith.subf %130, %133 : vector<12x12xf32>
    %135 = math.exp %134 : vector<12x12xf32>
    %cst_39 = arith.constant dense<0.000000e+00> : vector<12xf32>
    %136 = vector.multi_reduction <add>, %135, %cst_39 [1] : vector<12x12xf32> to vector<12xf32>
    %137 = vector.shape_cast %136 : vector<12xf32> to vector<12x1xf32>
    %138 = tpu.reciprocal %137 {approx = true} : vector<12x1xf32> -> vector<12x1xf32>
    %139 = vector.broadcast %138 : vector<12x1xf32> to vector<12x12xf32>
    %140 = arith.mulf %135, %139 : vector<12x12xf32>
    %141 = arith.truncf %140 : vector<12x12xf32> to vector<12x12xbf16>
    %cst_40 = arith.constant dense<0.000000e+00> : vector<12x4xf32>
    %142 = tpu.matmul %141, %125, %cst_40 {dimension_numbers = #tpu.dot_dimension_numbers<[1], [0], [0], [1], [0, 0, 1, 1], [], []>} : vector<12x12xbf16>, vector<12x4xbf16>, vector<12x4xf32> -> vector<12x4xf32>
    %143 = arith.truncf %142 : vector<12x4xf32> to vector<12x4xbf16>
    %144 = vector.extract_strided_slice %10 {offsets = [0, 16], sizes = [32, 4], strides = [1, 1]} : vector<32x32xbf16> to vector<32x4xbf16>
    %cst_41 = arith.constant dense<0.000000e+00> : vector<12x32xf32>
    %145 = tpu.matmul %143, %144, %cst_41 {dimension_numbers = #tpu.dot_dimension_numbers<[1], [1], [0], [0], [0, 0, 1, 0], [], []>} : vector<12x4xbf16>, vector<32x4xbf16>, vector<12x32xf32> -> vector<12x32xf32>
    %146 = arith.addf %119, %145 : vector<12x32xf32>
    %147 = vector.extract_strided_slice %7 {offsets = [0, 20], sizes = [12, 4], strides = [1, 1]} : vector<12x96xf32> to vector<12x4xf32>
    %148 = arith.truncf %147 : vector<12x4xf32> to vector<12x4xbf16>
    %149 = vector.extract_strided_slice %7 {offsets = [0, 52], sizes = [12, 4], strides = [1, 1]} : vector<12x96xf32> to vector<12x4xf32>
    %150 = arith.truncf %149 : vector<12x4xf32> to vector<12x4xbf16>
    %151 = vector.extract_strided_slice %7 {offsets = [0, 84], sizes = [12, 4], strides = [1, 1]} : vector<12x96xf32> to vector<12x4xf32>
    %152 = arith.truncf %151 : vector<12x4xf32> to vector<12x4xbf16>
    %cst_42 = arith.constant dense<0.000000e+00> : vector<12x12xf32>
    %153 = tpu.matmul %148, %150, %cst_42 {dimension_numbers = #tpu.dot_dimension_numbers<[1], [1], [0], [0], [0, 0, 1, 0], [], []>} : vector<12x4xbf16>, vector<12x4xbf16>, vector<12x12xf32> -> vector<12x12xf32>
    %cst_43 = arith.constant 5.000000e-01 : f32
    %154 = vector.broadcast %cst_43 : f32 to vector<12x12xf32>
    %155 = arith.mulf %153, %154 : vector<12x12xf32>
    %156 = vector.broadcast %9 : vector<1x12xf32> to vector<12x12xf32>
    %157 = arith.addf %155, %156 : vector<12x12xf32>
    %cst_44 = arith.constant dense<0xFF800000> : vector<12xf32>
    %158 = vector.multi_reduction <maximumf>, %157, %cst_44 [1] : vector<12x12xf32> to vector<12xf32>
    %159 = vector.shape_cast %158 : vector<12xf32> to vector<12x1xf32>
    %160 = vector.broadcast %159 : vector<12x1xf32> to vector<12x12xf32>
    %161 = arith.subf %157, %160 : vector<12x12xf32>
    %162 = math.exp %161 : vector<12x12xf32>
    %cst_45 = arith.constant dense<0.000000e+00> : vector<12xf32>
    %163 = vector.multi_reduction <add>, %162, %cst_45 [1] : vector<12x12xf32> to vector<12xf32>
    %164 = vector.shape_cast %163 : vector<12xf32> to vector<12x1xf32>
    %165 = tpu.reciprocal %164 {approx = true} : vector<12x1xf32> -> vector<12x1xf32>
    %166 = vector.broadcast %165 : vector<12x1xf32> to vector<12x12xf32>
    %167 = arith.mulf %162, %166 : vector<12x12xf32>
    %168 = arith.truncf %167 : vector<12x12xf32> to vector<12x12xbf16>
    %cst_46 = arith.constant dense<0.000000e+00> : vector<12x4xf32>
    %169 = tpu.matmul %168, %152, %cst_46 {dimension_numbers = #tpu.dot_dimension_numbers<[1], [0], [0], [1], [0, 0, 1, 1], [], []>} : vector<12x12xbf16>, vector<12x4xbf16>, vector<12x4xf32> -> vector<12x4xf32>
    %170 = arith.truncf %169 : vector<12x4xf32> to vector<12x4xbf16>
    %171 = vector.extract_strided_slice %10 {offsets = [0, 20], sizes = [32, 4], strides = [1, 1]} : vector<32x32xbf16> to vector<32x4xbf16>
    %cst_47 = arith.constant dense<0.000000e+00> : vector<12x32xf32>
    %172 = tpu.matmul %170, %171, %cst_47 {dimension_numbers = #tpu.dot_dimension_numbers<[1], [1], [0], [0], [0, 0, 1, 0], [], []>} : vector<12x4xbf16>, vector<32x4xbf16>, vector<12x32xf32> -> vector<12x32xf32>
    %173 = arith.addf %146, %172 : vector<12x32xf32>
    %174 = vector.extract_strided_slice %7 {offsets = [0, 24], sizes = [12, 4], strides = [1, 1]} : vector<12x96xf32> to vector<12x4xf32>
    %175 = arith.truncf %174 : vector<12x4xf32> to vector<12x4xbf16>
    %176 = vector.extract_strided_slice %7 {offsets = [0, 56], sizes = [12, 4], strides = [1, 1]} : vector<12x96xf32> to vector<12x4xf32>
    %177 = arith.truncf %176 : vector<12x4xf32> to vector<12x4xbf16>
    %178 = vector.extract_strided_slice %7 {offsets = [0, 88], sizes = [12, 4], strides = [1, 1]} : vector<12x96xf32> to vector<12x4xf32>
    %179 = arith.truncf %178 : vector<12x4xf32> to vector<12x4xbf16>
    %cst_48 = arith.constant dense<0.000000e+00> : vector<12x12xf32>
    %180 = tpu.matmul %175, %177, %cst_48 {dimension_numbers = #tpu.dot_dimension_numbers<[1], [1], [0], [0], [0, 0, 1, 0], [], []>} : vector<12x4xbf16>, vector<12x4xbf16>, vector<12x12xf32> -> vector<12x12xf32>
    %cst_49 = arith.constant 5.000000e-01 : f32
    %181 = vector.broadcast %cst_49 : f32 to vector<12x12xf32>
    %182 = arith.mulf %180, %181 : vector<12x12xf32>
    %183 = vector.broadcast %9 : vector<1x12xf32> to vector<12x12xf32>
    %184 = arith.addf %182, %183 : vector<12x12xf32>
    %cst_50 = arith.constant dense<0xFF800000> : vector<12xf32>
    %185 = vector.multi_reduction <maximumf>, %184, %cst_50 [1] : vector<12x12xf32> to vector<12xf32>
    %186 = vector.shape_cast %185 : vector<12xf32> to vector<12x1xf32>
    %187 = vector.broadcast %186 : vector<12x1xf32> to vector<12x12xf32>
    %188 = arith.subf %184, %187 : vector<12x12xf32>
    %189 = math.exp %188 : vector<12x12xf32>
    %cst_51 = arith.constant dense<0.000000e+00> : vector<12xf32>
    %190 = vector.multi_reduction <add>, %189, %cst_51 [1] : vector<12x12xf32> to vector<12xf32>
    %191 = vector.shape_cast %190 : vector<12xf32> to vector<12x1xf32>
    %192 = tpu.reciprocal %191 {approx = true} : vector<12x1xf32> -> vector<12x1xf32>
    %193 = vector.broadcast %192 : vector<12x1xf32> to vector<12x12xf32>
    %194 = arith.mulf %189, %193 : vector<12x12xf32>
    %195 = arith.truncf %194 : vector<12x12xf32> to vector<12x12xbf16>
    %cst_52 = arith.constant dense<0.000000e+00> : vector<12x4xf32>
    %196 = tpu.matmul %195, %179, %cst_52 {dimension_numbers = #tpu.dot_dimension_numbers<[1], [0], [0], [1], [0, 0, 1, 1], [], []>} : vector<12x12xbf16>, vector<12x4xbf16>, vector<12x4xf32> -> vector<12x4xf32>
    %197 = arith.truncf %196 : vector<12x4xf32> to vector<12x4xbf16>
    %198 = vector.extract_strided_slice %10 {offsets = [0, 24], sizes = [32, 4], strides = [1, 1]} : vector<32x32xbf16> to vector<32x4xbf16>
    %cst_53 = arith.constant dense<0.000000e+00> : vector<12x32xf32>
    %199 = tpu.matmul %197, %198, %cst_53 {dimension_numbers = #tpu.dot_dimension_numbers<[1], [1], [0], [0], [0, 0, 1, 0], [], []>} : vector<12x4xbf16>, vector<32x4xbf16>, vector<12x32xf32> -> vector<12x32xf32>
    %200 = arith.addf %173, %199 : vector<12x32xf32>
    %201 = vector.extract_strided_slice %7 {offsets = [0, 28], sizes = [12, 4], strides = [1, 1]} : vector<12x96xf32> to vector<12x4xf32>
    %202 = arith.truncf %201 : vector<12x4xf32> to vector<12x4xbf16>
    %203 = vector.extract_strided_slice %7 {offsets = [0, 60], sizes = [12, 4], strides = [1, 1]} : vector<12x96xf32> to vector<12x4xf32>
    %204 = arith.truncf %203 : vector<12x4xf32> to vector<12x4xbf16>
    %205 = vector.extract_strided_slice %7 {offsets = [0, 92], sizes = [12, 4], strides = [1, 1]} : vector<12x96xf32> to vector<12x4xf32>
    %206 = arith.truncf %205 : vector<12x4xf32> to vector<12x4xbf16>
    %cst_54 = arith.constant dense<0.000000e+00> : vector<12x12xf32>
    %207 = tpu.matmul %202, %204, %cst_54 {dimension_numbers = #tpu.dot_dimension_numbers<[1], [1], [0], [0], [0, 0, 1, 0], [], []>} : vector<12x4xbf16>, vector<12x4xbf16>, vector<12x12xf32> -> vector<12x12xf32>
    %cst_55 = arith.constant 5.000000e-01 : f32
    %208 = vector.broadcast %cst_55 : f32 to vector<12x12xf32>
    %209 = arith.mulf %207, %208 : vector<12x12xf32>
    %210 = vector.broadcast %9 : vector<1x12xf32> to vector<12x12xf32>
    %211 = arith.addf %209, %210 : vector<12x12xf32>
    %cst_56 = arith.constant dense<0xFF800000> : vector<12xf32>
    %212 = vector.multi_reduction <maximumf>, %211, %cst_56 [1] : vector<12x12xf32> to vector<12xf32>
    %213 = vector.shape_cast %212 : vector<12xf32> to vector<12x1xf32>
    %214 = vector.broadcast %213 : vector<12x1xf32> to vector<12x12xf32>
    %215 = arith.subf %211, %214 : vector<12x12xf32>
    %216 = math.exp %215 : vector<12x12xf32>
    %cst_57 = arith.constant dense<0.000000e+00> : vector<12xf32>
    %217 = vector.multi_reduction <add>, %216, %cst_57 [1] : vector<12x12xf32> to vector<12xf32>
    %218 = vector.shape_cast %217 : vector<12xf32> to vector<12x1xf32>
    %219 = tpu.reciprocal %218 {approx = true} : vector<12x1xf32> -> vector<12x1xf32>
    %220 = vector.broadcast %219 : vector<12x1xf32> to vector<12x12xf32>
    %221 = arith.mulf %216, %220 : vector<12x12xf32>
    %222 = arith.truncf %221 : vector<12x12xf32> to vector<12x12xbf16>
    %cst_58 = arith.constant dense<0.000000e+00> : vector<12x4xf32>
    %223 = tpu.matmul %222, %206, %cst_58 {dimension_numbers = #tpu.dot_dimension_numbers<[1], [0], [0], [1], [0, 0, 1, 1], [], []>} : vector<12x12xbf16>, vector<12x4xbf16>, vector<12x4xf32> -> vector<12x4xf32>
    %224 = arith.truncf %223 : vector<12x4xf32> to vector<12x4xbf16>
    %225 = vector.extract_strided_slice %10 {offsets = [0, 28], sizes = [32, 4], strides = [1, 1]} : vector<32x32xbf16> to vector<32x4xbf16>
    %cst_59 = arith.constant dense<0.000000e+00> : vector<12x32xf32>
    %226 = tpu.matmul %224, %225, %cst_59 {dimension_numbers = #tpu.dot_dimension_numbers<[1], [1], [0], [0], [0, 0, 1, 0], [], []>} : vector<12x4xbf16>, vector<32x4xbf16>, vector<12x32xf32> -> vector<12x32xf32>
    %227 = arith.addf %200, %226 : vector<12x32xf32>
    %c0_60 = arith.constant 0 : index
    %c0_61 = arith.constant 0 : index
    %228 = vector.load %arg6[%c0_60, %c0_61] : memref<1x32xf32, #tpu.memory_space<vmem>>, vector<1x32xf32>
    %229 = vector.broadcast %228 : vector<1x32xf32> to vector<12x32xf32>
    %230 = arith.addf %227, %229 : vector<12x32xf32>
    %231 = arith.addf %1, %230 : vector<12x32xf32>
    %cst_62 = arith.constant dense<0.000000e+00> : vector<12xf32>
    %232 = vector.multi_reduction <add>, %231, %cst_62 [1] : vector<12x32xf32> to vector<12xf32>
    %233 = vector.shape_cast %232 : vector<12xf32> to vector<12x1xf32>
    %cst_63 = arith.constant 3.200000e+01 : f32
    %234 = vector.broadcast %cst_63 : f32 to vector<12x1xf32>
    %235 = arith.divf %233, %234 : vector<12x1xf32>
    %236 = vector.broadcast %235 : vector<12x1xf32> to vector<12x32xf32>
    %237 = arith.subf %231, %236 : vector<12x32xf32>
    %238 = arith.mulf %237, %237 : vector<12x32xf32>
    %cst_64 = arith.constant dense<0.000000e+00> : vector<12xf32>
    %239 = vector.multi_reduction <add>, %238, %cst_64 [1] : vector<12x32xf32> to vector<12xf32>
    %240 = vector.shape_cast %239 : vector<12xf32> to vector<12x1xf32>
    %cst_65 = arith.constant 3.200000e+01 : f32
    %241 = vector.broadcast %cst_65 : f32 to vector<12x1xf32>
    %242 = arith.divf %240, %241 : vector<12x1xf32>
    %243 = vector.broadcast %235 : vector<12x1xf32> to vector<12x32xf32>
    %244 = arith.subf %231, %243 : vector<12x32xf32>
    %cst_66 = arith.constant 9.99999974E-6 : f32
    %245 = vector.broadcast %cst_66 : f32 to vector<12x1xf32>
    %246 = arith.addf %242, %245 : vector<12x1xf32>
    %247 = math.rsqrt %246 : vector<12x1xf32>
    %248 = vector.broadcast %247 : vector<12x1xf32> to vector<12x32xf32>
    %249 = arith.mulf %244, %248 : vector<12x32xf32>
    %c0_67 = arith.constant 0 : index
    %c0_68 = arith.constant 0 : index
    %250 = vector.load %arg7[%c0_67, %c0_68] : memref<1x32xf32, #tpu.memory_space<vmem>>, vector<1x32xf32>
    %251 = vector.broadcast %250 : vector<1x32xf32> to vector<12x32xf32>
    %252 = arith.mulf %249, %251 : vector<12x32xf32>
    %c0_69 = arith.constant 0 : index
    %c0_70 = arith.constant 0 : index
    %253 = vector.load %arg8[%c0_69, %c0_70] : memref<1x32xf32, #tpu.memory_space<vmem>>, vector<1x32xf32>
    %254 = vector.broadcast %253 : vector<1x32xf32> to vector<12x32xf32>
    %255 = arith.addf %252, %254 : vector<12x32xf32>
    %256 = arith.truncf %255 : vector<12x32xf32> to vector<12x32xbf16>
    %c0_71 = arith.constant 0 : index
    %c0_72 = arith.constant 0 : index
    %257 = vector.load %arg9[%c0_71, %c0_72] : memref<128x32xbf16, #tpu.memory_space<vmem>>, vector<128x32xbf16>
    %cst_73 = arith.constant dense<0.000000e+00> : vector<12x128xf32>
    %258 = tpu.matmul %256, %257, %cst_73 {dimension_numbers = #tpu.dot_dimension_numbers<[1], [1], [0], [0], [0, 0, 1, 0], [], []>} : vector<12x32xbf16>, vector<128x32xbf16>, vector<12x128xf32> -> vector<12x128xf32>
    %c0_74 = arith.constant 0 : index
    %c0_75 = arith.constant 0 : index
    %259 = vector.load %arg10[%c0_74, %c0_75] : memref<1x128xf32, #tpu.memory_space<vmem>>, vector<1x128xf32>
    %260 = vector.broadcast %259 : vector<1x128xf32> to vector<12x128xf32>
    %261 = arith.addf %258, %260 : vector<12x128xf32>
    %cst_76 = arith.constant 0.000000e+00 : f32
    %262 = vector.broadcast %cst_76 : f32 to vector<12x128xf32>
    %263 = arith.maximumf %261, %262 : vector<12x128xf32>
    %264 = arith.truncf %263 : vector<12x128xf32> to vector<12x128xbf16>
    %c0_77 = arith.constant 0 : index
    %c0_78 = arith.constant 0 : index
    %265 = vector.load %arg11[%c0_77, %c0_78] : memref<32x128xbf16, #tpu.memory_space<vmem>>, vector<32x128xbf16>
    %cst_79 = arith.constant dense<0.000000e+00> : vector<12x32xf32>
    %266 = tpu.matmul %264, %265, %cst_79 {dimension_numbers = #tpu.dot_dimension_numbers<[1], [1], [0], [0], [0, 0, 1, 0], [], []>} : vector<12x128xbf16>, vector<32x128xbf16>, vector<12x32xf32> -> vector<12x32xf32>
    %c0_80 = arith.constant 0 : index
    %c0_81 = arith.constant 0 : index
    %267 = vector.load %arg12[%c0_80, %c0_81] : memref<1x32xf32, #tpu.memory_space<vmem>>, vector<1x32xf32>
    %268 = vector.broadcast %267 : vector<1x32xf32> to vector<12x32xf32>
    %269 = arith.addf %266, %268 : vector<12x32xf32>
    %270 = arith.addf %255, %269 : vector<12x32xf32>
    %cst_82 = arith.constant dense<0.000000e+00> : vector<12xf32>
    %271 = vector.multi_reduction <add>, %270, %cst_82 [1] : vector<12x32xf32> to vector<12xf32>
    %272 = vector.shape_cast %271 : vector<12xf32> to vector<12x1xf32>
    %cst_83 = arith.constant 3.200000e+01 : f32
    %273 = vector.broadcast %cst_83 : f32 to vector<12x1xf32>
    %274 = arith.divf %272, %273 : vector<12x1xf32>
    %275 = vector.broadcast %274 : vector<12x1xf32> to vector<12x32xf32>
    %276 = arith.subf %270, %275 : vector<12x32xf32>
    %277 = arith.mulf %276, %276 : vector<12x32xf32>
    %cst_84 = arith.constant dense<0.000000e+00> : vector<12xf32>
    %278 = vector.multi_reduction <add>, %277, %cst_84 [1] : vector<12x32xf32> to vector<12xf32>
    %279 = vector.shape_cast %278 : vector<12xf32> to vector<12x1xf32>
    %cst_85 = arith.constant 3.200000e+01 : f32
    %280 = vector.broadcast %cst_85 : f32 to vector<12x1xf32>
    %281 = arith.divf %279, %280 : vector<12x1xf32>
    %282 = vector.broadcast %274 : vector<12x1xf32> to vector<12x32xf32>
    %283 = arith.subf %270, %282 : vector<12x32xf32>
    %cst_86 = arith.constant 9.99999974E-6 : f32
    %284 = vector.broadcast %cst_86 : f32 to vector<12x1xf32>
    %285 = arith.addf %281, %284 : vector<12x1xf32>
    %286 = math.rsqrt %285 : vector<12x1xf32>
    %287 = vector.broadcast %286 : vector<12x1xf32> to vector<12x32xf32>
    %288 = arith.mulf %283, %287 : vector<12x32xf32>
    %c0_87 = arith.constant 0 : index
    %c0_88 = arith.constant 0 : index
    %289 = vector.load %arg13[%c0_87, %c0_88] : memref<1x32xf32, #tpu.memory_space<vmem>>, vector<1x32xf32>
    %290 = vector.broadcast %289 : vector<1x32xf32> to vector<12x32xf32>
    %291 = arith.mulf %288, %290 : vector<12x32xf32>
    %c0_89 = arith.constant 0 : index
    %c0_90 = arith.constant 0 : index
    %292 = vector.load %arg14[%c0_89, %c0_90] : memref<1x32xf32, #tpu.memory_space<vmem>>, vector<1x32xf32>
    %293 = vector.broadcast %292 : vector<1x32xf32> to vector<12x32xf32>
    %294 = arith.addf %291, %293 : vector<12x32xf32>
    %c0_91 = arith.constant 0 : index
    %c0_92 = arith.constant 0 : index
    %c0_93 = arith.constant 0 : index
    %295 = vector.load %arg15[%c0_91, %c0_92, %c0_93] : memref<1x12x32xf32, #tpu.memory_space<vmem>>, vector<1x12x32xf32>
    %296 = vector.shape_cast %295 : vector<1x12x32xf32> to vector<12x32xf32>
    %297 = vector.shape_cast %294 : vector<12x32xf32> to vector<1x12x32xf32>
    tpu.vector_store %arg15[%c0_91, %c0_92, %c0_93], %297 {strides = array<i32>} : memref<1x12x32xf32, #tpu.memory_space<vmem>>, vector<1x12x32xf32>,
    return
  }
  func.func @transform_0(%arg0: i32) -> (i32, i32, i32) {
    %c0_i32 = arith.constant 0 : i32
    %c0_i32_0 = arith.constant 0 : i32
    %c0_i32_1 = arith.constant 0 : i32
    return %arg0, %c0_i32, %c0_i32_0 : i32, i32, i32
  }
  func.func @transform_1(%arg0: i32) -> (i32, i32, i32) {
    %c0_i32 = arith.constant 0 : i32
    %c0_i32_0 = arith.constant 0 : i32
    %c0_i32_1 = arith.constant 0 : i32
    return %arg0, %c0_i32, %c0_i32_0 : i32, i32, i32
  }
  func.func @transform_2(%arg0: i32) -> (i32, i32) {
    %c0_i32 = arith.constant 0 : i32
    %c0_i32_0 = arith.constant 0 : i32
    %c0_i32_1 = arith.constant 0 : i32
    return %c0_i32, %c0_i32_0 : i32, i32
  }
  func.func @transform_3(%arg0: i32) -> (i32, i32) {
    %c0_i32 = arith.constant 0 : i32
    %c0_i32_0 = arith.constant 0 : i32
    %c0_i32_1 = arith.constant 0 : i32
    return %c0_i32, %c0_i32_0 : i32, i32
  }
  func.func @transform_4(%arg0: i32) -> (i32, i32) {
    %c0_i32 = arith.constant 0 : i32
    %c0_i32_0 = arith.constant 0 : i32
    %c0_i32_1 = arith.constant 0 : i32
    return %c0_i32, %c0_i32_0 : i32, i32
  }
  func.func @transform_5(%arg0: i32) -> (i32, i32) {
    %c0_i32 = arith.constant 0 : i32
    %c0_i32_0 = arith.constant 0 : i32
    %c0_i32_1 = arith.constant 0 : i32
    return %c0_i32, %c0_i32_0 : i32, i32
  }
  func.func @transform_6(%arg0: i32) -> (i32, i32) {
    %c0_i32 = arith.constant 0 : i32
    %c0_i32_0 = arith.constant 0 : i32
    %c0_i32_1 = arith.constant 0 : i32
    return %c0_i32, %c0_i32_0 : i32, i32
  }
  func.func @transform_7(%arg0: i32) -> (i32, i32) {
    %c0_i32 = arith.constant 0 : i32
    %c0_i32_0 = arith.constant 0 : i32
    %c0_i32_1 = arith.constant 0 : i32
    return %c0_i32, %c0_i32_0 : i32, i32
  }
  func.func @transform_8(%arg0: i32) -> (i32, i32) {
    %c0_i32 = arith.constant 0 : i32
    %c0_i32_0 = arith.constant 0 : i32
    %c0_i32_1 = arith.constant 0 : i32
    return %c0_i32, %c0_i32_0 : i32, i32
  }
  func.func @transform_9(%arg0: i32) -> (i32, i32) {
    %c0_i32 = arith.constant 0 : i32
    %c0_i32_0 = arith.constant 0 : i32
    %c0_i32_1 = arith.constant 0 : i32
    return %c0_i32, %c0_i32_0 : i32, i32
  }
  func.func @transform_10(%arg0: i32) -> (i32, i32) {
    %c0_i32 = arith.constant 0 : i32
    %c0_i32_0 = arith.constant 0 : i32
    %c0_i32_1 = arith.constant 0 : i32
    return %c0_i32, %c0_i32_0 : i32, i32
  }
  func.func @transform_11(%arg0: i32) -> (i32, i32) {
    %c0_i32 = arith.constant 0 : i32
    %c0_i32_0 = arith.constant 0 : i32
    %c0_i32_1 = arith.constant 0 : i32
    return %c0_i32, %c0_i32_0 : i32, i32
  }
  func.func @transform_12(%arg0: i32) -> (i32, i32) {
    %c0_i32 = arith.constant 0 : i32
    %c0_i32_0 = arith.constant 0 : i32
    %c0_i32_1 = arith.constant 0 : i32
    return %c0_i32, %c0_i32_0 : i32, i32
  }
  func.func @transform_13(%arg0: i32) -> (i32, i32) {
    %c0_i32 = arith.constant 0 : i32
    %c0_i32_0 = arith.constant 0 : i32
    %c0_i32_1 = arith.constant 0 : i32
    return %c0_i32, %c0_i32_0 : i32, i32
  }
  func.func @transform_14(%arg0: i32) -> (i32, i32, i32) {
    %c0_i32 = arith.constant 0 : i32
    %c0_i32_0 = arith.constant 0 : i32
    %c0_i32_1 = arith.constant 0 : i32
    return %arg0, %c0_i32, %c0_i32_0 : i32, i32, i32
  }
}

</mosaic_0001>

<llo_original>
// kernel: attn2_forward.2
$region0: #{attn2_forward.2}
  #allocation0 [shape = 'u32[]', space=smem, size = 0x4, offset = 0x4, fixed_abs, tag = 'smem constant byte address 0x4 - core index']
  #allocation1 [shape = 'u32[144,128]{1,0:T(1,128)}', space=vmem, size = 0x12000, scoped, tag = 'internal scratch']
  %s0 = inlined_call_operand.vmem [shape: f32[2,12,32], index: 0, kind: input, shape index: {}]
  %s1 = inlined_call_operand.vmem [shape: f32[2,1,12], index: 1, kind: input, shape index: {}]
  %s2 = inlined_call_operand.vmem [shape: bf16[96,32], index: 2, kind: input, shape index: {}]
  %s3 = inlined_call_operand.vmem [shape: f32[1,96], index: 3, kind: input, shape index: {}]
  %s4 = inlined_call_operand.vmem [shape: bf16[32,32], index: 4, kind: input, shape index: {}]
  %s5 = inlined_call_operand.vmem [shape: f32[1,32], index: 5, kind: input, shape index: {}]
  %s6 = inlined_call_operand.vmem [shape: f32[1,32], index: 6, kind: input, shape index: {}]
  %s7 = inlined_call_operand.vmem [shape: f32[1,32], index: 7, kind: input, shape index: {}]
  %s8 = inlined_call_operand.vmem [shape: bf16[128,32], index: 8, kind: input, shape index: {}]
  %s9 = inlined_call_operand.vmem [shape: f32[1,128], index: 9, kind: input, shape index: {}]
  %s10 = inlined_call_operand.vmem [shape: bf16[32,128], index: 10, kind: input, shape index: {}]
  %s11 = inlined_call_operand.vmem [shape: f32[1,32], index: 11, kind: input, shape index: {}]
  %s12 = inlined_call_operand.vmem [shape: f32[1,32], index: 12, kind: input, shape index: {}]
  %s13 = inlined_call_operand.vmem [shape: f32[1,32], index: 13, kind: input, shape index: {}]
  %s14 = inlined_call_operand.vmem [shape: f32[2,12,32], index: 14, kind: output, shape index: {}]
  %s15 = sld [smem:[#allocation0]]
  $region89: #{attn2_forward.2} parent=0
    _
  %s17 = ssub.s32 1, %s15
  %s18 = scalar_select 0, %s17, %s15
  loop: start=0, step=1, limit=4
  $region2: #{attn2_forward.2} parent=0 // loop_pre_header
    _
  $region3: #{attn2_forward.2} parent=0 // loop_header
    %s20 = sphi 0, %s24
    %p21 = scmp.ge.s32.totalorder %s20, 4
    %s30 = sphi 0, %s32
    %s33 = sphi 0, %s30
    %s34 = sphi 0, %s33
    %s50 = sphi 0, %s34
    %s56 = sphi 0, %s58
    %s59 = sphi 0, %s56
    %s60 = sphi 0, %s59
    %s76 = sphi 0, %s60
    %s80 = sphi 0, %s80
    %s82 = sphi 0, %s80
    %s83 = sphi 0, %s82
    %s97 = sphi 0, %s83
    %s101 = sphi 0, %s101
    %s103 = sphi 0, %s101
    %s104 = sphi 0, %s103
    %s118 = sphi 0, %s104
    %s122 = sphi 0, %s122
    %s124 = sphi 0, %s122
    %s125 = sphi 0, %s124
    %s139 = sphi 0, %s125
    %s143 = sphi 0, %s143
    %s145 = sphi 0, %s143
    %s146 = sphi 0, %s145
    %s160 = sphi 0, %s146
    %s164 = sphi 0, %s164
    %s166 = sphi 0, %s164
    %s167 = sphi 0, %s166
    %s181 = sphi 0, %s167
    %s185 = sphi 0, %s185
    %s187 = sphi 0, %s185
    %s188 = sphi 0, %s187
    %s202 = sphi 0, %s188
    %s206 = sphi 0, %s206
    %s208 = sphi 0, %s206
    %s209 = sphi 0, %s208
    %s223 = sphi 0, %s209
    %s227 = sphi 0, %s227
    %s229 = sphi 0, %s227
    %s230 = sphi 0, %s229
    %s244 = sphi 0, %s230
    %s248 = sphi 0, %s248
    %s250 = sphi 0, %s248
    %s251 = sphi 0, %s250
    %s265 = sphi 0, %s251
    %s269 = sphi 0, %s269
    %s271 = sphi 0, %s269
    %s272 = sphi 0, %s271
    %s286 = sphi 0, %s272
    %s290 = sphi 0, %s290
    %s292 = sphi 0, %s290
    %s293 = sphi 0, %s292
    %s307 = sphi 0, %s293
    %s311 = sphi 0, %s311
    %s313 = sphi 0, %s311
    %s314 = sphi 0, %s313
    %s328 = sphi 0, %s314
    %s334 = sphi 0, %s336
    %s337 = sphi 0, %s334
    %s338 = sphi 0, %s337
    %s354 = sphi 0, %s338
  $region4: #{attn2_forward.2} parent=0 // loop_header_branch
    %23 = sbr.rel (%p21) target = $region8
  $region5: #{attn2_forward.2} parent=0 // loop_body
    %s25 = ssub.s32 %s20, 1
    %s26 = ssub.s32 %s20, 2
    %s27 = sadd.s32 %s20, 1
    %s28 = ssub.s32 %s20, %s27
    %p29 = scmp.eq.s32.totalorder %s28, 0
    %s31 = sadd.s32 %s30, 1
    %s32 = scalar_select %p29, %s30, %s31
    %p35 = pneg %p29
    %p36 = scmp.eq.s32.totalorder %s20, 1
    %p37 = por %p35, %p36
    %p38 = scmp.ne.s32.totalorder %s30, %s33
    %p39 = scmp.eq.s32.totalorder %s20, 0
    %p40 = por %p38, %p39
    %p41 = scmp.ne.s32.totalorder %s30, %s33
    %p42 = scmp.eq.s32.totalorder %s25, 1
    %p43 = por %p41, %p42
    %p44 = scmp.ne.s32.totalorder %s33, %s34
    %p45 = scmp.eq.s32.totalorder %s25, 0
    %p46 = por %p44, %p45
    %p47 = scmp.ne.s32.totalorder %s33, %s34
    %p48 = scmp.eq.s32.totalorder %s26, 1
    %p49 = por %p47, %p48
    %p51 = scmp.ne.s32.totalorder %s34, %s50
    %p52 = scmp.eq.s32.totalorder %s26, 0
    %p53 = por %p51, %p52
    %s54 = ssub.s32 %s20, %s27
    %p55 = scmp.eq.s32.totalorder %s54, 0
    %s57 = sadd.s32 %s56, 1
    %s58 = scalar_select %p55, %s56, %s57
    %p61 = pneg %p55
    %p62 = scmp.eq.s32.totalorder %s20, 1
    %p63 = por %p61, %p62
    %p64 = scmp.ne.s32.totalorder %s56, %s59
    %p65 = scmp.eq.s32.totalorder %s20, 0
    %p66 = por %p64, %p65
    %p67 = scmp.ne.s32.totalorder %s56, %s59
    %p68 = scmp.eq.s32.totalorder %s25, 1
    %p69 = por %p67, %p68
    %p70 = scmp.ne.s32.totalorder %s59, %s60
    %p71 = scmp.eq.s32.totalorder %s25, 0
    %p72 = por %p70, %p71
    %p73 = scmp.ne.s32.totalorder %s59, %s60
    %p74 = scmp.eq.s32.totalorder %s26, 1
    %p75 = por %p73, %p74
    %p77 = scmp.ne.s32.totalorder %s60, %s76
    %p78 = scmp.eq.s32.totalorder %s26, 0
    %p79 = por %p77, %p78
    %s81 = sadd.s32 %s80, 1
    %p84 = scmp.eq.s32.totalorder %s20, 1
    %p85 = scmp.ne.s32.totalorder %s80, %s82
    %p86 = scmp.eq.s32.totalorder %s20, 0
    %p87 = por %p85, %p86
    %p88 = scmp.ne.s32.totalorder %s80, %s82
    %p89 = scmp.eq.s32.totalorder %s25, 1
    %p90 = por %p88, %p89
    %p91 = scmp.ne.s32.totalorder %s82, %s83
    %p92 = scmp.eq.s32.totalorder %s25, 0
    %p93 = por %p91, %p92
    %p94 = scmp.ne.s32.totalorder %s82, %s83
    %p95 = scmp.eq.s32.totalorder %s26, 1
    %p96 = por %p94, %p95
    %p98 = scmp.ne.s32.totalorder %s83, %s97
    %p99 = scmp.eq.s32.totalorder %s26, 0
    %p100 = por %p98, %p99
    %s102 = sadd.s32 %s101, 1
    %p105 = scmp.eq.s32.totalorder %s20, 1
    %p106 = scmp.ne.s32.totalorder %s101, %s103
    %p107 = scmp.eq.s32.totalorder %s20, 0
    %p108 = por %p106, %p107
    %p109 = scmp.ne.s32.totalorder %s101, %s103
    %p110 = scmp.eq.s32.totalorder %s25, 1
    %p111 = por %p109, %p110
    %p112 = scmp.ne.s32.totalorder %s103, %s104
    %p113 = scmp.eq.s32.totalorder %s25, 0
    %p114 = por %p112, %p113
    %p115 = scmp.ne.s32.totalorder %s103, %s104
    %p116 = scmp.eq.s32.totalorder %s26, 1
    %p117 = por %p115, %p116
    %p119 = scmp.ne.s32.totalorder %s104, %s118
    %p120 = scmp.eq.s32.totalorder %s26, 0
    %p121 = por %p119, %p120
    %s123 = sadd.s32 %s122, 1
    %p126 = scmp.eq.s32.totalorder %s20, 1
    %p127 = scmp.ne.s32.totalorder %s122, %s124
    %p128 = scmp.eq.s32.totalorder %s20, 0
    %p129 = por %p127, %p128
    %p130 = scmp.ne.s32.totalorder %s122, %s124
    %p131 = scmp.eq.s32.totalorder %s25, 1
    %p132 = por %p130, %p131
    %p133 = scmp.ne.s32.totalorder %s124, %s125
    %p134 = scmp.eq.s32.totalorder %s25, 0
    %p135 = por %p133, %p134
    %p136 = scmp.ne.s32.totalorder %s124, %s125
    %p137 = scmp.eq.s32.totalorder %s26, 1
    %p138 = por %p136, %p137
    %p140 = scmp.ne.s32.totalorder %s125, %s139
    %p141 = scmp.eq.s32.totalorder %s26, 0
    %p142 = por %p140, %p141
    %s144 = sadd.s32 %s143, 1
    %p147 = scmp.eq.s32.totalorder %s20, 1
    %p148 = scmp.ne.s32.totalorder %s143, %s145
    %p149 = scmp.eq.s32.totalorder %s20, 0
    %p150 = por %p148, %p149
    %p151 = scmp.ne.s32.totalorder %s143, %s145
    %p152 = scmp.eq.s32.totalorder %s25, 1
    %p153 = por %p151, %p152
    %p154 = scmp.ne.s32.totalorder %s145, %s146
    %p155 = scmp.eq.s32.totalorder %s25, 0
    %p156 = por %p154, %p155
    %p157 = scmp.ne.s32.totalorder %s145, %s146
    %p158 = scmp.eq.s32.totalorder %s26, 1
    %p159 = por %p157, %p158
    %p161 = scmp.ne.s32.totalorder %s146, %s160
    %p162 = scmp.eq.s32.totalorder %s26, 0
    %p163 = por %p161, %p162
    %s165 = sadd.s32 %s164, 1
    %p168 = scmp.eq.s32.totalorder %s20, 1
    %p169 = scmp.ne.s32.totalorder %s164, %s166
    %p170 = scmp.eq.s32.totalorder %s20, 0
    %p171 = por %p169, %p170
    %p172 = scmp.ne.s32.totalorder %s164, %s166
    %p173 = scmp.eq.s32.totalorder %s25, 1
    %p174 = por %p172, %p173
    %p175 = scmp.ne.s32.totalorder %s166, %s167
    %p176 = scmp.eq.s32.totalorder %s25, 0
    %p177 = por %p175, %p176
    %p178 = scmp.ne.s32.totalorder %s166, %s167
    %p179 = scmp.eq.s32.totalorder %s26, 1
    %p180 = por %p178, %p179
    %p182 = scmp.ne.s32.totalorder %s167, %s181
    %p183 = scmp.eq.s32.totalorder %s26, 0
    %p184 = por %p182, %p183
    %s186 = sadd.s32 %s185, 1
    %p189 = scmp.eq.s32.totalorder %s20, 1
    %p190 = scmp.ne.s32.totalorder %s185, %s187
    %p191 = scmp.eq.s32.totalorder %s20, 0
    %p192 = por %p190, %p191
    %p193 = scmp.ne.s32.totalorder %s185, %s187
    %p194 = scmp.eq.s32.totalorder %s25, 1
    %p195 = por %p193, %p194
    %p196 = scmp.ne.s32.totalorder %s187, %s188
    %p197 = scmp.eq.s32.totalorder %s25, 0
    %p198 = por %p196, %p197
    %p199 = scmp.ne.s32.totalorder %s187, %s188
    %p200 = scmp.eq.s32.totalorder %s26, 1
    %p201 = por %p199, %p200
    %p203 = scmp.ne.s32.totalorder %s188, %s202
    %p204 = scmp.eq.s32.totalorder %s26, 0
    %p205 = por %p203, %p204
    %s207 = sadd.s32 %s206, 1
    %p210 = scmp.eq.s32.totalorder %s20, 1
    %p211 = scmp.ne.s32.totalorder %s206, %s208
    %p212 = scmp.eq.s32.totalorder %s20, 0
    %p213 = por %p211, %p212
    %p214 = scmp.ne.s32.totalorder %s206, %s208
    %p215 = scmp.eq.s32.totalorder %s25, 1
    %p216 = por %p214, %p215
    %p217 = scmp.ne.s32.totalorder %s208, %s209
    %p218 = scmp.eq.s32.totalorder %s25, 0
    %p219 = por %p217, %p218
    %p220 = scmp.ne.s32.totalorder %s208, %s209
    %p221 = scmp.eq.s32.totalorder %s26, 1
    %p222 = por %p220, %p221
    %p224 = scmp.ne.s32.totalorder %s209, %s223
    %p225 = scmp.eq.s32.totalorder %s26, 0
    %p226 = por %p224, %p225
    %s228 = sadd.s32 %s227, 1
    %p231 = scmp.eq.s32.totalorder %s20, 1
    %p232 = scmp.ne.s32.totalorder %s227, %s229
    %p233 = scmp.eq.s32.totalorder %s20, 0
    %p234 = por %p232, %p233
    %p235 = scmp.ne.s32.totalorder %s227, %s229
    %p236 = scmp.eq.s32.totalorder %s25, 1
    %p237 = por %p235, %p236
    %p238 = scmp.ne.s32.totalorder %s229, %s230
    %p239 = scmp.eq.s32.totalorder %s25, 0
    %p240 = por %p238, %p239
    %p241 = scmp.ne.s32.totalorder %s229, %s230
    %p242 = scmp.eq.s32.totalorder %s26, 1
    %p243 = por %p241, %p242
    %p245 = scmp.ne.s32.totalorder %s230, %s244
    %p246 = scmp.eq.s32.totalorder %s26, 0
    %p247 = por %p245, %p246
    %s249 = sadd.s32 %s248, 1
    %p252 = scmp.eq.s32.totalorder %s20, 1
    %p253 = scmp.ne.s32.totalorder %s248, %s250
    %p254 = scmp.eq.s32.totalorder %s20, 0
    %p255 = por %p253, %p254
    %p256 = scmp.ne.s32.totalorder %s248, %s250
    %p257 = scmp.eq.s32.totalorder %s25, 1
    %p258 = por %p256, %p257
    %p259 = scmp.ne.s32.totalorder %s250, %s251
    %p260 = scmp.eq.s32.totalorder %s25, 0
    %p261 = por %p259, %p260
    %p262 = scmp.ne.s32.totalorder %s250, %s251
    %p263 = scmp.eq.s32.totalorder %s26, 1
    %p264 = por %p262, %p263
    %p266 = scmp.ne.s32.totalorder %s251, %s265
    %p267 = scmp.eq.s32.totalorder %s26, 0
    %p268 = por %p266, %p267
    %s270 = sadd.s32 %s269, 1
    %p273 = scmp.eq.s32.totalorder %s20, 1
    %p274 = scmp.ne.s32.totalorder %s269, %s271
    %p275 = scmp.eq.s32.totalorder %s20, 0
    %p276 = por %p274, %p275
    %p277 = scmp.ne.s32.totalorder %s269, %s271
    %p278 = scmp.eq.s32.totalorder %s25, 1
    %p279 = por %p277, %p278
    %p280 = scmp.ne.s32.totalorder %s271, %s272
    %p281 = scmp.eq.s32.totalorder %s25, 0
    %p282 = por %p280, %p281
    %p283 = scmp.ne.s32.totalorder %s271, %s272
    %p284 = scmp.eq.s32.totalorder %s26, 1
    %p285 = por %p283, %p284
    %p287 = scmp.ne.s32.totalorder %s272, %s286
    %p288 = scmp.eq.s32.totalorder %s26, 0
    %p289 = por %p287, %p288
    %s291 = sadd.s32 %s290, 1
    %p294 = scmp.eq.s32.totalorder %s20, 1
    %p295 = scmp.ne.s32.totalorder %s290, %s292
    %p296 = scmp.eq.s32.totalorder %s20, 0
    %p297 = por %p295, %p296
    %p298 = scmp.ne.s32.totalorder %s290, %s292
    %p299 = scmp.eq.s32.totalorder %s25, 1
    %p300 = por %p298, %p299
    %p301 = scmp.ne.s32.totalorder %s292, %s293
    %p302 = scmp.eq.s32.totalorder %s25, 0
    %p303 = por %p301, %p302
    %p304 = scmp.ne.s32.totalorder %s292, %s293
    %p305 = scmp.eq.s32.totalorder %s26, 1
    %p306 = por %p304, %p305
    %p308 = scmp.ne.s32.totalorder %s293, %s307
    %p309 = scmp.eq.s32.totalorder %s26, 0
    %p310 = por %p308, %p309
    %s312 = sadd.s32 %s311, 1
    %p315 = scmp.eq.s32.totalorder %s20, 1
    %p316 = scmp.ne.s32.totalorder %s311, %s313
    %p317 = scmp.eq.s32.totalorder %s20, 0
    %p318 = por %p316, %p317
    %p319 = scmp.ne.s32.totalorder %s311, %s313
    %p320 = scmp.eq.s32.totalorder %s25, 1
    %p321 = por %p319, %p320
    %p322 = scmp.ne.s32.totalorder %s313, %s314
    %p323 = scmp.eq.s32.totalorder %s25, 0
    %p324 = por %p322, %p323
    %p325 = scmp.ne.s32.totalorder %s313, %s314
    %p326 = scmp.eq.s32.totalorder %s26, 1
    %p327 = por %p325, %p326
    %p329 = scmp.ne.s32.totalorder %s314, %s328
    %p330 = scmp.eq.s32.totalorder %s26, 0
    %p331 = por %p329, %p330
    %s332 = ssub.s32 %s20, %s27
    %p333 = scmp.eq.s32.totalorder %s332, 0
    %s335 = sadd.s32 %s334, 1
    %s336 = scalar_select %p333, %s334, %s335
    %p339 = pneg %p333
    %p340 = scmp.eq.s32.totalorder %s20, 1
    %p341 = por %p339, %p340
    %p342 = scmp.ne.s32.totalorder %s334, %s337
    %p343 = scmp.eq.s32.totalorder %s20, 0
    %p344 = por %p342, %p343
    %p345 = scmp.ne.s32.totalorder %s334, %s337
    %p346 = scmp.eq.s32.totalorder %s25, 1
    %p347 = por %p345, %p346
    %p348 = scmp.ne.s32.totalorder %s337, %s338
    %p349 = scmp.eq.s32.totalorder %s25, 0
    %p350 = por %p348, %p349
    %p351 = scmp.ne.s32.totalorder %s337, %s338
    %p352 = scmp.eq.s32.totalorder %s26, 1
    %p353 = por %p351, %p352
    %p355 = scmp.ne.s32.totalorder %s338, %s354
    %p356 = scmp.eq.s32.totalorder %s26, 0
    %p357 = por %p355, %p356
    %p358 = scmp.le.s32.totalorder 1, %s20
    %p359 = scmp.lt.s32.totalorder %s20, 3
    %p360 = pnand %p358, %p359
    %p361 = pneg %p360
    // Predicated region
    $region9: #{attn2_forward.2} parent=5 // pred_check
      _
    $region10: #{attn2_forward.2} parent=5 // pred_check_branch
      %363 = sbr.rel (%p360) target = $region12
    $region11: #{attn2_forward.2} parent=5 // pred_region
      %s364 = ssub.s32 %s20, 1
      // Predicated region
      $region13: #{attn2_forward.2} parent=11 // pred_check
        %p365 = pneg %p93
      $region14: #{attn2_forward.2} parent=11 // pred_check_branch
        %367 = sbr.rel (%p365) target = $region16
      $region15: #{attn2_forward.2} parent=11 // pred_region
        _
      $region16: #{attn2_forward.2} parent=11 // pred_fallthru
        _
      // Predicated region
      $region17: #{attn2_forward.2} parent=11 // pred_check
        %p368 = pneg %p114
      $region18: #{attn2_forward.2} parent=11 // pred_check_branch
        %370 = sbr.rel (%p368) target = $region20
      $region19: #{attn2_forward.2} parent=11 // pred_region
        _
      $region20: #{attn2_forward.2} parent=11 // pred_fallthru
        _
      // Predicated region
      $region21: #{attn2_forward.2} parent=11 // pred_check
        %p371 = pneg %p135
      $region22: #{attn2_forward.2} parent=11 // pred_check_branch
        %373 = sbr.rel (%p371) target = $region24
      $region23: #{attn2_forward.2} parent=11 // pred_region
        _
      $region24: #{attn2_forward.2} parent=11 // pred_fallthru
        _
      // Predicated region
      $region25: #{attn2_forward.2} parent=11 // pred_check
        %p374 = pneg %p156
      $region26: #{attn2_forward.2} parent=11 // pred_check_branch
        %376 = sbr.rel (%p374) target = $region28
      $region27: #{attn2_forward.2} parent=11 // pred_region
        _
      $region28: #{attn2_forward.2} parent=11 // pred_fallthru
        _
      // Predicated region
      $region29: #{attn2_forward.2} parent=11 // pred_check
        %p377 = pneg %p177
      $region30: #{attn2_forward.2} parent=11 // pred_check_branch
        %379 = sbr.rel (%p377) target = $region32
      $region31: #{attn2_forward.2} parent=11 // pred_region
        _
      $region32: #{attn2_forward.2} parent=11 // pred_fallthru
        _
      // Predicated region
      $region33: #{attn2_forward.2} parent=11 // pred_check
        %p380 = pneg %p198
      $region34: #{attn2_forward.2} parent=11 // pred_check_branch
        %382 = sbr.rel (%p380) target = $region36
      $region35: #{attn2_forward.2} parent=11 // pred_region
        _
      $region36: #{attn2_forward.2} parent=11 // pred_fallthru
        _
      // Predicated region
      $region37: #{attn2_forward.2} parent=11 // pred_check
        %p383 = pneg %p219
      $region38: #{attn2_forward.2} parent=11 // pred_check_branch
        %385 = sbr.rel (%p383) target = $region40
      $region39: #{attn2_forward.2} parent=11 // pred_region
        _
      $region40: #{attn2_forward.2} parent=11 // pred_fallthru
        _
      // Predicated region
      $region41: #{attn2_forward.2} parent=11 // pred_check
        %p386 = pneg %p240
      $region42: #{attn2_forward.2} parent=11 // pred_check_branch
        %388 = sbr.rel (%p386) target = $region44
      $region43: #{attn2_forward.2} parent=11 // pred_region
        _
      $region44: #{attn2_forward.2} parent=11 // pred_fallthru
        _
      // Predicated region
      $region45: #{attn2_forward.2} parent=11 // pred_check
        %p389 = pneg %p261
      $region46: #{attn2_forward.2} parent=11 // pred_check_branch
        %391 = sbr.rel (%p389) target = $region48
      $region47: #{attn2_forward.2} parent=11 // pred_region
        _
      $region48: #{attn2_forward.2} parent=11 // pred_fallthru
        _
      // Predicated region
      $region49: #{attn2_forward.2} parent=11 // pred_check
        %p392 = pneg %p282
      $region50: #{attn2_forward.2} parent=11 // pred_check_branch
        %394 = sbr.rel (%p392) target = $region52
      $region51: #{attn2_forward.2} parent=11 // pred_region
        _
      $region52: #{attn2_forward.2} parent=11 // pred_fallthru
        _
      // Predicated region
      $region53: #{attn2_forward.2} parent=11 // pred_check
        %p395 = pneg %p303
      $region54: #{attn2_forward.2} parent=11 // pred_check_branch
        %397 = sbr.rel (%p395) target = $region56
      $region55: #{attn2_forward.2} parent=11 // pred_region
        _
      $region56: #{attn2_forward.2} parent=11 // pred_fallthru
        _
      // Predicated region
      $region57: #{attn2_forward.2} parent=11 // pred_check
        %p398 = pneg %p324
      $region58: #{attn2_forward.2} parent=11 // pred_check_branch
        %400 = sbr.rel (%p398) target = $region60
      $region59: #{attn2_forward.2} parent=11 // pred_region
        _
      $region60: #{attn2_forward.2} parent=11 // pred_fallthru
        _
    $region12: #{attn2_forward.2} parent=5 // pred_fallthru
      _
    %p401 = scmp.lt.s32.totalorder %s20, 2
    // Predicated region
    $region61: #{attn2_forward.2} parent=5 // pred_check
      %p402 = pneg %p401
    $region62: #{attn2_forward.2} parent=5 // pred_check_branch
      %404 = sbr.rel (%p402) target = $region64
    $region63: #{attn2_forward.2} parent=5 // pred_region
      // Predicated region
      $region65: #{attn2_forward.2} parent=63 // pred_check
        %p405 = pneg %p40
      $region66: #{attn2_forward.2} parent=63 // pred_check_branch
        %407 = sbr.rel (%p405) target = $region68
      $region67: #{attn2_forward.2} parent=63 // pred_region
        %p408 = scmp.lt.s32.totalorder %s20, 1
        %s409 = scalar_select %p408, %s20, 1
        %s410 = smul.addr %s409, 2
        %s411 = smul.addr %s410, 8
        %s412 = scalar_lea.vmem %s0, %s411
      $region68: #{attn2_forward.2} parent=63 // pred_fallthru
        _
      // Predicated region
      $region69: #{attn2_forward.2} parent=63 // pred_check
        %p413 = pneg %p66
      $region70: #{attn2_forward.2} parent=63 // pred_check_branch
        %415 = sbr.rel (%p413) target = $region72
      $region71: #{attn2_forward.2} parent=63 // pred_region
        %p416 = scmp.lt.s32.totalorder %s20, 1
        %s417 = scalar_select %p416, %s20, 1
        %s418 = scalar_lea.vmem %s1, %s417
      $region72: #{attn2_forward.2} parent=63 // pred_fallthru
        _
    $region64: #{attn2_forward.2} parent=5 // pred_fallthru
      _
    %p419 = scmp.le.s32.totalorder 1, %s20
    %p420 = scmp.lt.s32.totalorder %s20, 3
    %p421 = pnand %p419, %p420
    %p422 = pneg %p421
    // Predicated region
    $region73: #{attn2_forward.2} parent=5 // pred_check
      _
    $region74: #{attn2_forward.2} parent=5 // pred_check_branch
      %424 = sbr.rel (%p421) target = $region76
    $region75: #{attn2_forward.2} parent=5 // pred_region
      %s425 = ssub.s32 %s20, 1
      %p426 = scmp.lt.s32.totalorder %s25, 1
      %s427 = scalar_select %p426, %s25, 1
      %s428 = smul.addr %s427, 2
      %s429 = smul.addr %s428, 8
      %s430 = scalar_lea.vmem %s0, %s429
      %p431 = pneg %p46
      %p432 = pneg %p43
      %p433 = scmp.lt.s32.totalorder %s25, 1
      %s434 = scalar_select %p433, %s25, 1
      %s435 = scalar_lea.vmem %s1, %s434
      %p436 = pneg %p72
      %p437 = pneg %p69
      %p438 = pneg %p93
      %p439 = pneg %p90
      %p440 = pneg %p114
      %p441 = pneg %p111
      %p442 = pneg %p135
      %p443 = pneg %p132
      %p444 = pneg %p156
      %p445 = pneg %p153
      %p446 = pneg %p177
      %p447 = pneg %p174
      %p448 = pneg %p198
      %p449 = pneg %p195
      %p450 = pneg %p219
      %p451 = pneg %p216
      %p452 = pneg %p240
      %p453 = pneg %p237
      %p454 = pneg %p261
      %p455 = pneg %p258
      %p456 = pneg %p282
      %p457 = pneg %p279
      %p458 = pneg %p303
      %p459 = pneg %p300
      %p460 = pneg %p324
      %p461 = pneg %p321
      %p462 = pneg %p350
      %p463 = pneg %p347
      %p464 = scmp.lt.s32.totalorder %s25, 1
      %s465 = scalar_select %p464, %s25, 1
      %s466 = smul.addr %s465, 2
      %s467 = smul.addr %s466, 8
      %s468 = scalar_lea.vmem %s14, %s467
      %p469 = scmp.lt.s32.totalorder %s25, 1
      %s470 = scalar_select %p469, %s25, 1
      %s471 = smul.addr %s470, 2
      %s472 = smul.addr %s471, 8
      %s473 = scalar_lea.vmem %s0, %s472
      %p474 = scmp.lt.s32.totalorder %s25, 1
      %s475 = scalar_select %p474, %s25, 1
      %s476 = scalar_lea.vmem %s1, %s475
      %p477 = scmp.lt.s32.totalorder %s25, 1
      %s478 = scalar_select %p477, %s25, 1
      %s479 = smul.addr %s478, 2
      %s480 = smul.addr %s479, 8
      %s481 = scalar_lea.vmem %s14, %s480
      %v483 = vld [vmem:[%s473] sm:$0xff]
      %v484 = vld [vmem:[%s473 + $0x8] sm:$0xf]
      %v485 = vpack.c.bf16 %v484, %v483
      %v486 = vld [vmem:[%s2] sm:$0xf]
      %v487 = vld [vmem:[%s2 + $0x4] sm:$0xf]
      %v488 = vld [vmem:[%s2 + $0x8] sm:$0xf]
      %v489 = vld [vmem:[%s2 + $0xc] sm:$0xf]
      %v490 = vld [vmem:[%s2 + $0x10] sm:$0xf]
      %v491 = vld [vmem:[%s2 + $0x14] sm:$0xf]
      %v492 = vld [vmem:[%s2 + $0x18] sm:$0xf]
      %v493 = vld [vmem:[%s2 + $0x1c] sm:$0xf]
      %v494 = vld [vmem:[%s2 + $0x20] sm:$0xf]
      %v495 = vld [vmem:[%s2 + $0x24] sm:$0xf]
      %v496 = vld [vmem:[%s2 + $0x28] sm:$0xf]
      %v497 = vld [vmem:[%s2 + $0x2c] sm:$0xf]
      %v498 = vld [vmem:[%s3] sm:$0x1]
      %v500 = vlaneseq
      %v501 = vshrl.u32 %v500, 7
      %v502 = vsub.s32 0, %v501
      %v503 = vrot.slane %v498, %v502
      %v517 = vunpack.c.l.b16 %v486
      %v518 = vunpack.c.l.b16 %v487
      %v519 = vunpack.c.l.b16 %v488
      %v520 = vunpack.c.l.b16 %v489
      %v521 = vunpack.c.l.b16 %v490
      %v522 = vunpack.c.l.b16 %v491
      %v523 = vunpack.c.l.b16 %v492
      %v524 = vunpack.c.l.b16 %v493
      %v525 = vunpack.c.l.b16 %v494
      %v526 = vunpack.c.l.b16 %v495
      %v527 = vunpack.c.l.b16 %v496
      %v528 = vunpack.c.l.b16 %v497
      %v529 = vpack.c.b16 %v518, %v517
      %v530 = vpack.c.b16 %v520, %v519
      %v531 = vpack.c.b16 %v522, %v521
      %v532 = vpack.c.b16 %v524, %v523
      %v533 = vpack.c.b16 %v526, %v525
      %v534 = vpack.c.b16 %v528, %v527
      %vm535 = vcmask 261120
      %v537 = vsel %vm535, %v485, 0
      %v540 = vsel %vm535, %v529, 0
      %v543 = vsel %vm535, %v530, 0
      %v546 = vsel %vm535, %v531, 0
      %v549 = vsel %vm535, %v532, 0
      %v552 = vsel %vm535, %v533, 0
      %v555 = vsel %vm535, %v534, 0
      %557 = vmatprep.subr.bf16.mxu0 0
      %558 = vmatpush1.bf16.xpose.msra.mxu0 0
      %559 = vmatprep.subr.bf16.mxu0 0
      %560 = vmatpush1.bf16.xpose.msra.mxu0 0
      %561 = vmatprep.subr.bf16.mxu0 0
      %562 = vmatpush1.bf16.xpose.msra.mxu0 %v555
      %563 = vmatprep.subr.bf16.mxu0 0
      %564 = vmatpush1.bf16.xpose.msra.mxu0 %v552
      %565 = vmatprep.subr.bf16.mxu0 0
      %566 = vmatpush1.bf16.xpose.msra.mxu0 %v549
      %567 = vmatprep.subr.bf16.mxu0 0
      %568 = vmatpush1.bf16.xpose.msra.mxu0 %v546
      %569 = vmatprep.subr.bf16.mxu0 0
      %570 = vmatpush1.bf16.xpose.msra.mxu0 %v543
      %571 = vmatprep.subr.bf16.mxu0 0
      %572 = vmatpush1.bf16.xpose.msra.mxu0 %v540
      %573 = vmatprep.subr.bf16.mxu0 0
      %574 = vmatpush2.bf16.xpose.msra.mxu0 0
      %575 = vmatprep.subr.bf16.mxu0 0
      %576 = vmatpush2.bf16.xpose.msra.mxu0 0
      %577 = vmatprep.subr.bf16.mxu0 0
      %578 = vmatpush2.bf16.xpose.msra.mxu0 0
      %579 = vmatprep.subr.bf16.mxu0 0
      %580 = vmatpush2.bf16.xpose.msra.mxu0 0
      %581 = vmatprep.subr.bf16.mxu0 0
      %582 = vmatpush2.bf16.xpose.msra.mxu0 0
      %583 = vmatprep.subr.bf16.mxu0 0
      %584 = vmatpush2.bf16.xpose.msra.mxu0 0
      %585 = vmatprep.subr.bf16.mxu0 0
      %586 = vmatpush2.bf16.xpose.msra.mxu0 0
      %587 = vmatprep.subr.bf16.mxu0 0
      %588 = vmatpush2.bf16.xpose.msra.mxu0 0
      %589 = vmatprep.mubr.bf16.mxu0 0
      %590 = vmatmul.mubr.bf16.gmra.mxu0 %v537
      %v591 = vpop.f32.mrf.mxu0
      %v592 = vadd.f32 %v503, %v591
      %v593 = vpop.f32.mrf.mxu0
      %v594 = vpop.f32.mrf.mxu0
      %v595 = vadd.f32 %v503, %v594
      %v596 = vpop.f32.mrf.mxu0
      %597 = vdwg.mxu0
      %v598 = vld [vmem:[%s476] sm:$0x1]
      %v599 = vld [vmem:[%s4] sm:$0xf]
      %v600 = vld [vmem:[%s4 + $0x4] sm:$0xf]
      %v601 = vld [vmem:[%s4 + $0x8] sm:$0xf]
      %v602 = vld [vmem:[%s4 + $0xc] sm:$0xf]
      %v603 = vpack.c.bf16 %v595, %v592
      %605 = vrot.lane.b32.xlu0 %v603, 96
      %v606 = vpop.permute.xlu0 %605
      %vm607 = vcmask 31744
      %v609 = vsel %vm607, %v603, 0
      %v612 = vsel %vm607, %v606, 0
      %614 = vmatprep.subr.bf16.mxu0 0
      %615 = vmatpush1.bf16.xpose.msra.mxu0 0
      %616 = vmatprep.subr.bf16.mxu0 0
      %617 = vmatpush1.bf16.xpose.msra.mxu0 0
      %618 = vmatprep.subr.bf16.mxu0 0
      %619 = vmatpush1.bf16.xpose.msra.mxu0 0
      %620 = vmatprep.subr.bf16.mxu0 0
      %621 = vmatpush1.bf16.xpose.msra.mxu0 0
      %622 = vmatprep.subr.bf16.mxu0 0
      %623 = vmatpush1.bf16.xpose.msra.mxu0 0
      %624 = vmatprep.subr.bf16.mxu0 0
      %625 = vmatpush1.bf16.xpose.msra.mxu0 0
      %626 = vmatprep.subr.bf16.mxu0 0
      %627 = vmatpush1.bf16.xpose.msra.mxu0 0
      %628 = vmatprep.subr.bf16.mxu0 0
      %629 = vmatpush1.bf16.xpose.msra.mxu0 %v612
      %630 = vmatprep.subr.bf16.mxu0 0
      %631 = vmatpush2.bf16.xpose.msra.mxu0 0
      %632 = vmatprep.subr.bf16.mxu0 0
      %633 = vmatpush2.bf16.xpose.msra.mxu0 0
      %634 = vmatprep.subr.bf16.mxu0 0
      %635 = vmatpush2.bf16.xpose.msra.mxu0 0
      %636 = vmatprep.subr.bf16.mxu0 0
      %637 = vmatpush2.bf16.xpose.msra.mxu0 0
      %638 = vmatprep.subr.bf16.mxu0 0
      %639 = vmatpush2.bf16.xpose.msra.mxu0 0
      %640 = vmatprep.subr.bf16.mxu0 0
      %641 = vmatpush2.bf16.xpose.msra.mxu0 0
      %642 = vmatprep.subr.bf16.mxu0 0
      %643 = vmatpush2.bf16.xpose.msra.mxu0 0
      %644 = vmatprep.subr.bf16.mxu0 0
      %645 = vmatpush2.bf16.xpose.msra.mxu0 0
      %646 = vmatprep.mubr.bf16.mxu0 0
      %647 = vmatmul.mubr.bf16.gmra.mxu0 %v609
      %v648 = vpop.f32.mrf.mxu0
      %v649 = vadd.f32 0.0, %v648
      %v650 = vpop.f32.mrf.mxu0
      %v651 = vpop.f32.mrf.mxu0
      %v652 = vadd.f32 0.0, %v651
      %v653 = vpop.f32.mrf.mxu0
      %654 = vdwg.mxu0
      %v655 = vmul.f32 %v649, 0.5
      %v656 = vmul.f32 %v652, 0.5
      %v658 = vlaneseq
      %v659 = vshrl.u32 %v658, 7
      %v660 = vsub.s32 0, %v659
      %v661 = vrot.slane %v598, %v660
      %v663 = vadd.f32 %v655, %v661
      %v664 = vadd.f32 %v656, %v661
      %vm665 = vcmask 97280
      %v666 = vsel %vm665, %v663, -inf
      %667 = vmax.xlane.f32.xlu0 %v666
      %v668 = vpop.xlane.xlu0 %667
      %vm669 = vcmask 93184
      %v670 = vsel %vm669, %v664, -inf
      %671 = vmax.xlane.f32.xlu0 %v670
      %v672 = vpop.xlane.xlu0 %671
      %v673 = vsub.f32 %v663, %v668
      %v674 = vsub.f32 %v664, %v672
      %v675 = vmul.f32 %v673, 1.442695
      %v676 = vpow.pop %v675
      %v677 = vmul.f32 %v674, 1.442695
      %v678 = vpow.pop %v677
      %v679 = vsel %vm665, %v676, 0.0
      %680 = vadd.xlane.f32.xlu0 %v679
      %v681 = vpop.xlane.xlu0 %680
      %v682 = vsel %vm669, %v678, 0.0
      %683 = vadd.xlane.f32.xlu0 %v682
      %v684 = vpop.xlane.xlu0 %683
      %v685 = vrcp.pop %v681
      %v686 = vrcp.pop %v684
      %v687 = vmul.f32 %v676, %v685
      %v688 = vmul.f32 %v678, %v686
      %v689 = vpack.c.bf16 %v688, %v687
      %690 = vrot.lane.b32.xlu0 %v603, 64
      %v691 = vpop.permute.xlu0 %690
      %v693 = vsel %vm665, %v689, 0
      %vm695 = vcmask 1045504
      %v697 = vsel %vm695, %v691, 0
      %699 = vmatprep.subr.bf16.mxu0 0
      %700 = vmatpush1.bf16.msra.mxu0 0
      %701 = vmatprep.subr.bf16.mxu0 0
      %702 = vmatpush1.bf16.msra.mxu0 0
      %703 = vmatprep.subr.bf16.mxu0 0
      %704 = vmatpush1.bf16.msra.mxu0 0
      %705 = vmatprep.subr.bf16.mxu0 0
      %706 = vmatpush1.bf16.msra.mxu0 0
      %707 = vmatprep.subr.bf16.mxu0 0
      %708 = vmatpush1.bf16.msra.mxu0 0
      %709 = vmatprep.subr.bf16.mxu0 0
      %710 = vmatpush1.bf16.msra.mxu0 0
      %711 = vmatprep.subr.bf16.mxu0 0
      %712 = vmatpush1.bf16.msra.mxu0 0
      %713 = vmatprep.subr.bf16.mxu0 0
      %714 = vmatpush1.bf16.msra.mxu0 %v697
      %715 = vmatprep.subr.bf16.mxu0 0
      %716 = vmatpush2.bf16.msra.mxu0 0
      %717 = vmatprep.subr.bf16.mxu0 0
      %718 = vmatpush2.bf16.msra.mxu0 0
      %719 = vmatprep.subr.bf16.mxu0 0
      %720 = vmatpush2.bf16.msra.mxu0 0
      %721 = vmatprep.subr.bf16.mxu0 0
      %722 = vmatpush2.bf16.msra.mxu0 0
      %723 = vmatprep.subr.bf16.mxu0 0
      %724 = vmatpush2.bf16.msra.mxu0 0
      %725 = vmatprep.subr.bf16.mxu0 0
      %726 = vmatpush2.bf16.msra.mxu0 0
      %727 = vmatprep.subr.bf16.mxu0 0
      %728 = vmatpush2.bf16.msra.mxu0 0
      %729 = vmatprep.subr.bf16.mxu0 0
      %730 = vmatpush2.bf16.msra.mxu0 0
      %731 = vmatprep.mubr.bf16.mxu0 0
      %732 = vmatmul.mubr.bf16.gmra.mxu0 %v693
      %v733 = vpop.f32.mrf.mxu0
      %v734 = vadd.f32 0.0, %v733
      %v735 = vpop.f32.mrf.mxu0
      %v736 = vpop.f32.mrf.mxu0
      %v737 = vadd.f32 0.0, %v736
      %v738 = vpop.f32.mrf.mxu0
      %739 = vdwg.mxu0
      %v740 = vpack.c.bf16 %v737, %v734
      %741 = vrot.lane.b32.xlu0 %v603, 124
      %v742 = vpop.permute.xlu0 %741
      %743 = vrot.lane.b32.xlu0 %v603, 92
      %v744 = vpop.permute.xlu0 %743
      %v746 = vsel %vm607, %v742, 0
      %v749 = vsel %vm607, %v744, 0
      %751 = vmatprep.subr.bf16.mxu0 0
      %752 = vmatpush1.bf16.xpose.msra.mxu0 0
      %753 = vmatprep.subr.bf16.mxu0 0
      %754 = vmatpush1.bf16.xpose.msra.mxu0 0
      %755 = vmatprep.subr.bf16.mxu0 0
      %756 = vmatpush1.bf16.xpose.msra.mxu0 0
      %757 = vmatprep.subr.bf16.mxu0 0
      %758 = vmatpush1.bf16.xpose.msra.mxu0 0
      %759 = vmatprep.subr.bf16.mxu0 0
      %760 = vmatpush1.bf16.xpose.msra.mxu0 0
      %761 = vmatprep.subr.bf16.mxu0 0
      %762 = vmatpush1.bf16.xpose.msra.mxu0 0
      %763 = vmatprep.subr.bf16.mxu0 0
      %764 = vmatpush1.bf16.xpose.msra.mxu0 0
      %765 = vmatprep.subr.bf16.mxu0 0
      %766 = vmatpush1.bf16.xpose.msra.mxu0 %v749
      %767 = vmatprep.subr.bf16.mxu0 0
      %768 = vmatpush2.bf16.xpose.msra.mxu0 0
      %769 = vmatprep.subr.bf16.mxu0 0
      %770 = vmatpush2.bf16.xpose.msra.mxu0 0
      %771 = vmatprep.subr.bf16.mxu0 0
      %772 = vmatpush2.bf16.xpose.msra.mxu0 0
      %773 = vmatprep.subr.bf16.mxu0 0
      %774 = vmatpush2.bf16.xpose.msra.mxu0 0
      %775 = vmatprep.subr.bf16.mxu0 0
      %776 = vmatpush2.bf16.xpose.msra.mxu0 0
      %777 = vmatprep.subr.bf16.mxu0 0
      %778 = vmatpush2.bf16.xpose.msra.mxu0 0
      %779 = vmatprep.subr.bf16.mxu0 0
      %780 = vmatpush2.bf16.xpose.msra.mxu0 0
      %781 = vmatprep.subr.bf16.mxu0 0
      %782 = vmatpush2.bf16.xpose.msra.mxu0 0
      %783 = vmatprep.mubr.bf16.mxu0 0
      %784 = vmatmul.mubr.bf16.gmra.mxu0 %v746
      %v785 = vpop.f32.mrf.mxu0
      %v786 = vadd.f32 0.0, %v785
      %v787 = vpop.f32.mrf.mxu0
      %v788 = vpop.f32.mrf.mxu0
      %v789 = vadd.f32 0.0, %v788
      %v790 = vpop.f32.mrf.mxu0
      %791 = vdwg.mxu0
      %v792 = vmul.f32 %v786, 0.5
      %v793 = vmul.f32 %v789, 0.5
      %v794 = vadd.f32 %v792, %v661
      %v795 = vadd.f32 %v793, %v661
      %v796 = vsel %vm665, %v794, -inf
      %797 = vmax.xlane.f32.xlu0 %v796
      %v798 = vpop.xlane.xlu0 %797
      %v799 = vsel %vm669, %v795, -inf
      %800 = vmax.xlane.f32.xlu0 %v799
      %v801 = vpop.xlane.xlu0 %800
      %v802 = vsub.f32 %v794, %v798
      %v803 = vsub.f32 %v795, %v801
      %v804 = vmul.f32 %v802, 1.442695
      %v805 = vpow.pop %v804
      %v806 = vmul.f32 %v803, 1.442695
      %v807 = vpow.pop %v806
      %v808 = vsel %vm665, %v805, 0.0
      %809 = vadd.xlane.f32.xlu0 %v808
      %v810 = vpop.xlane.xlu0 %809
      %v811 = vsel %vm669, %v807, 0.0
      %812 = vadd.xlane.f32.xlu0 %v811
      %v813 = vpop.xlane.xlu0 %812
      %v814 = vrcp.pop %v810
      %v815 = vrcp.pop %v813
      %v816 = vmul.f32 %v805, %v814
      %v817 = vmul.f32 %v807, %v815
      %v818 = vpack.c.bf16 %v817, %v816
      %819 = vrot.lane.b32.xlu0 %v603, 60
      %v820 = vpop.permute.xlu0 %819
      %v822 = vsel %vm665, %v818, 0
      %v825 = vsel %vm695, %v820, 0
      %827 = vmatprep.subr.bf16.mxu0 0
      %828 = vmatpush1.bf16.msra.mxu0 0
      %829 = vmatprep.subr.bf16.mxu0 0
      %830 = vmatpush1.bf16.msra.mxu0 0
      %831 = vmatprep.subr.bf16.mxu0 0
      %832 = vmatpush1.bf16.msra.mxu0 0
      %833 = vmatprep.subr.bf16.mxu0 0
      %834 = vmatpush1.bf16.msra.mxu0 0
      %835 = vmatprep.subr.bf16.mxu0 0
      %836 = vmatpush1.bf16.msra.mxu0 0
      %837 = vmatprep.subr.bf16.mxu0 0
      %838 = vmatpush1.bf16.msra.mxu0 0
      %839 = vmatprep.subr.bf16.mxu0 0
      %840 = vmatpush1.bf16.msra.mxu0 0
      %841 = vmatprep.subr.bf16.mxu0 0
      %842 = vmatpush1.bf16.msra.mxu0 %v825
      %843 = vmatprep.subr.bf16.mxu0 0
      %844 = vmatpush2.bf16.msra.mxu0 0
      %845 = vmatprep.subr.bf16.mxu0 0
      %846 = vmatpush2.bf16.msra.mxu0 0
      %847 = vmatprep.subr.bf16.mxu0 0
      %848 = vmatpush2.bf16.msra.mxu0 0
      %849 = vmatprep.subr.bf16.mxu0 0
      %850 = vmatpush2.bf16.msra.mxu0 0
      %851 = vmatprep.subr.bf16.mxu0 0
      %852 = vmatpush2.bf16.msra.mxu0 0
      %853 = vmatprep.subr.bf16.mxu0 0
      %854 = vmatpush2.bf16.msra.mxu0 0
      %855 = vmatprep.subr.bf16.mxu0 0
      %856 = vmatpush2.bf16.msra.mxu0 0
      %857 = vmatprep.subr.bf16.mxu0 0
      %858 = vmatpush2.bf16.msra.mxu0 0
      %859 = vmatprep.mubr.bf16.mxu0 0
      %860 = vmatmul.mubr.bf16.gmra.mxu0 %v822
      %v861 = vpop.f32.mrf.mxu0
      %v862 = vadd.f32 0.0, %v861
      %v863 = vpop.f32.mrf.mxu0
      %v864 = vpop.f32.mrf.mxu0
      %v865 = vadd.f32 0.0, %v864
      %v866 = vpop.f32.mrf.mxu0
      %867 = vdwg.mxu0
      %v868 = vpack.c.bf16 %v865, %v862
      %v873 = vunpack.c.l.b16 %v599
      %v874 = vunpack.c.l.b16 %v600
      %v875 = vunpack.c.l.b16 %v601
      %v876 = vunpack.c.l.b16 %v602
      %v877 = vpack.c.b16 %v874, %v873
      %v878 = vpack.c.b16 %v876, %v875
      %879 = vrot.lane.b32.xlu0 %v877, 124
      %v880 = vpop.permute.xlu0 %879
      %881 = vrot.lane.b32.xlu0 %v878, 124
      %v882 = vpop.permute.xlu0 %881
      %v884 = vsel %vm607, %v868, 0
      %v887 = vsel %vm607, %v880, 0
      %v890 = vsel %vm607, %v882, 0
      %892 = vmatprep.subr.bf16.mxu0 0
      %893 = vmatpush1.bf16.xpose.msra.mxu0 0
      %894 = vmatprep.subr.bf16.mxu0 0
      %895 = vmatpush1.bf16.xpose.msra.mxu0 0
      %896 = vmatprep.subr.bf16.mxu0 0
      %897 = vmatpush1.bf16.xpose.msra.mxu0 0
      %898 = vmatprep.subr.bf16.mxu0 0
      %899 = vmatpush1.bf16.xpose.msra.mxu0 0
      %900 = vmatprep.subr.bf16.mxu0 0
      %901 = vmatpush1.bf16.xpose.msra.mxu0 0
      %902 = vmatprep.subr.bf16.mxu0 0
      %903 = vmatpush1.bf16.xpose.msra.mxu0 0
      %904 = vmatprep.subr.bf16.mxu0 0
      %905 = vmatpush1.bf16.xpose.msra.mxu0 %v890
      %906 = vmatprep.subr.bf16.mxu0 0
      %907 = vmatpush1.bf16.xpose.msra.mxu0 %v887
      %908 = vmatprep.subr.bf16.mxu0 0
      %909 = vmatpush2.bf16.xpose.msra.mxu0 0
      %910 = vmatprep.subr.bf16.mxu0 0
      %911 = vmatpush2.bf16.xpose.msra.mxu0 0
      %912 = vmatprep.subr.bf16.mxu0 0
      %913 = vmatpush2.bf16.xpose.msra.mxu0 0
      %914 = vmatprep.subr.bf16.mxu0 0
      %915 = vmatpush2.bf16.xpose.msra.mxu0 0
      %916 = vmatprep.subr.bf16.mxu0 0
      %917 = vmatpush2.bf16.xpose.msra.mxu0 0
      %918 = vmatprep.subr.bf16.mxu0 0
      %919 = vmatpush2.bf16.xpose.msra.mxu0 0
      %920 = vmatprep.subr.bf16.mxu0 0
      %921 = vmatpush2.bf16.xpose.msra.mxu0 0
      %922 = vmatprep.subr.bf16.mxu0 0
      %923 = vmatpush2.bf16.xpose.msra.mxu0 0
      %924 = vmatprep.mubr.bf16.mxu0 0
      %925 = vmatmul.mubr.bf16.gmra.mxu0 %v884
      %v926 = vpop.f32.mrf.mxu0
      %v927 = vadd.f32 0.0, %v926
      %v928 = vpop.f32.mrf.mxu0
      %v929 = vpop.f32.mrf.mxu0
      %v930 = vadd.f32 0.0, %v929
      %v931 = vpop.f32.mrf.mxu0
      %932 = vdwg.mxu0
      %v934 = vsel %vm607, %v740, 0
      %v937 = vsel %vm607, %v877, 0
      %v940 = vsel %vm607, %v878, 0
      %942 = vmatprep.subr.bf16.mxu0 0
      %943 = vmatpush1.bf16.xpose.msra.mxu0 0
      %944 = vmatprep.subr.bf16.mxu0 0
      %945 = vmatpush1.bf16.xpose.msra.mxu0 0
      %946 = vmatprep.subr.bf16.mxu0 0
      %947 = vmatpush1.bf16.xpose.msra.mxu0 0
      %948 = vmatprep.subr.bf16.mxu0 0
      %949 = vmatpush1.bf16.xpose.msra.mxu0 0
      %950 = vmatprep.subr.bf16.mxu0 0
      %951 = vmatpush1.bf16.xpose.msra.mxu0 0
      %952 = vmatprep.subr.bf16.mxu0 0
      %953 = vmatpush1.bf16.xpose.msra.mxu0 0
      %954 = vmatprep.subr.bf16.mxu0 0
      %955 = vmatpush1.bf16.xpose.msra.mxu0 %v940
      %956 = vmatprep.subr.bf16.mxu0 0
      %957 = vmatpush1.bf16.xpose.msra.mxu0 %v937
      %958 = vmatprep.subr.bf16.mxu0 0
      %959 = vmatpush2.bf16.xpose.msra.mxu0 0
      %960 = vmatprep.subr.bf16.mxu0 0
      %961 = vmatpush2.bf16.xpose.msra.mxu0 0
      %962 = vmatprep.subr.bf16.mxu0 0
      %963 = vmatpush2.bf16.xpose.msra.mxu0 0
      %964 = vmatprep.subr.bf16.mxu0 0
      %965 = vmatpush2.bf16.xpose.msra.mxu0 0
      %966 = vmatprep.subr.bf16.mxu0 0
      %967 = vmatpush2.bf16.xpose.msra.mxu0 0
      %968 = vmatprep.subr.bf16.mxu0 0
      %969 = vmatpush2.bf16.xpose.msra.mxu0 0
      %970 = vmatprep.subr.bf16.mxu0 0
      %971 = vmatpush2.bf16.xpose.msra.mxu0 0
      %972 = vmatprep.subr.bf16.mxu0 0
      %973 = vmatpush2.bf16.xpose.msra.mxu0 0
      %974 = vmatprep.mubr.bf16.mxu0 0
      %975 = vmatmul.mubr.bf16.gmra.mxu0 %v934
      %v976 = vpop.f32.mrf.mxu0
      %v977 = vadd.f32 %v927, %v976
      %v978 = vpop.f32.mrf.mxu0
      %v979 = vpop.f32.mrf.mxu0
      %v980 = vadd.f32 %v930, %v979
      %v981 = vpop.f32.mrf.mxu0
      %982 = vdwg.mxu0
      %983 = vrot.lane.b32.xlu0 %v603, 120
      %v984 = vpop.permute.xlu0 %983
      %985 = vrot.lane.b32.xlu0 %v603, 88
      %v986 = vpop.permute.xlu0 %985
      %v988 = vsel %vm607, %v984, 0
      %v991 = vsel %vm607, %v986, 0
      %993 = vmatprep.subr.bf16.mxu0 0
      %994 = vmatpush1.bf16.xpose.msra.mxu0 0
      %995 = vmatprep.subr.bf16.mxu0 0
      %996 = vmatpush1.bf16.xpose.msra.mxu0 0
      %997 = vmatprep.subr.bf16.mxu0 0
      %998 = vmatpush1.bf16.xpose.msra.mxu0 0
      %999 = vmatprep.subr.bf16.mxu0 0
      %1000 = vmatpush1.bf16.xpose.msra.mxu0 0
      %1001 = vmatprep.subr.bf16.mxu0 0
      %1002 = vmatpush1.bf16.xpose.msra.mxu0 0
      %1003 = vmatprep.subr.bf16.mxu0 0
      %1004 = vmatpush1.bf16.xpose.msra.mxu0 0
      %1005 = vmatprep.subr.bf16.mxu0 0
      %1006 = vmatpush1.bf16.xpose.msra.mxu0 0
      %1007 = vmatprep.subr.bf16.mxu0 0
      %1008 = vmatpush1.bf16.xpose.msra.mxu0 %v991
      %1009 = vmatprep.subr.bf16.mxu0 0
      %1010 = vmatpush2.bf16.xpose.msra.mxu0 0
      %1011 = vmatprep.subr.bf16.mxu0 0
      %1012 = vmatpush2.bf16.xpose.msra.mxu0 0
      %1013 = vmatprep.subr.bf16.mxu0 0
      %1014 = vmatpush2.bf16.xpose.msra.mxu0 0
      %1015 = vmatprep.subr.bf16.mxu0 0
      %1016 = vmatpush2.bf16.xpose.msra.mxu0 0
      %1017 = vmatprep.subr.bf16.mxu0 0
      %1018 = vmatpush2.bf16.xpose.msra.mxu0 0
      %1019 = vmatprep.subr.bf16.mxu0 0
      %1020 = vmatpush2.bf16.xpose.msra.mxu0 0
      %1021 = vmatprep.subr.bf16.mxu0 0
      %1022 = vmatpush2.bf16.xpose.msra.mxu0 0
      %1023 = vmatprep.subr.bf16.mxu0 0
      %1024 = vmatpush2.bf16.xpose.msra.mxu0 0
      %1025 = vmatprep.mubr.bf16.mxu0 0
      %1026 = vmatmul.mubr.bf16.gmra.mxu0 %v988
      %v1027 = vpop.f32.mrf.mxu0
      %v1028 = vadd.f32 0.0, %v1027
      %v1029 = vpop.f32.mrf.mxu0
      %v1030 = vpop.f32.mrf.mxu0
      %v1031 = vadd.f32 0.0, %v1030
      %v1032 = vpop.f32.mrf.mxu0
      %1033 = vdwg.mxu0
      %v1034 = vmul.f32 %v1028, 0.5
      %v1035 = vmul.f32 %v1031, 0.5
      %v1036 = vadd.f32 %v1034, %v661
      %v1037 = vadd.f32 %v1035, %v661
      %v1038 = vsel %vm665, %v1036, -inf
      %1039 = vmax.xlane.f32.xlu0 %v1038
      %v1040 = vpop.xlane.xlu0 %1039
      %v1041 = vsel %vm669, %v1037, -inf
      %1042 = vmax.xlane.f32.xlu0 %v1041
      %v1043 = vpop.xlane.xlu0 %1042
      %v1044 = vsub.f32 %v1036, %v1040
      %v1045 = vsub.f32 %v1037, %v1043
      %v1046 = vmul.f32 %v1044, 1.442695
      %v1047 = vpow.pop %v1046
      %v1048 = vmul.f32 %v1045, 1.442695
      %v1049 = vpow.pop %v1048
      %v1050 = vsel %vm665, %v1047, 0.0
      %1051 = vadd.xlane.f32.xlu0 %v1050
      %v1052 = vpop.xlane.xlu0 %1051
      %v1053 = vsel %vm669, %v1049, 0.0
      %1054 = vadd.xlane.f32.xlu0 %v1053
      %v1055 = vpop.xlane.xlu0 %1054
      %v1056 = vrcp.pop %v1052
      %v1057 = vrcp.pop %v1055
      %v1058 = vmul.f32 %v1047, %v1056
      %v1059 = vmul.f32 %v1049, %v1057
      %v1060 = vpack.c.bf16 %v1059, %v1058
      %1061 = vrot.lane.b32.xlu0 %v603, 56
      %v1062 = vpop.permute.xlu0 %1061
      %v1064 = vsel %vm665, %v1060, 0
      %v1067 = vsel %vm695, %v1062, 0
      %1069 = vmatprep.subr.bf16.mxu0 0
      %1070 = vmatpush1.bf16.msra.mxu0 0
      %1071 = vmatprep.subr.bf16.mxu0 0
      %1072 = vmatpush1.bf16.msra.mxu0 0
      %1073 = vmatprep.subr.bf16.mxu0 0
      %1074 = vmatpush1.bf16.msra.mxu0 0
      %1075 = vmatprep.subr.bf16.mxu0 0
      %1076 = vmatpush1.bf16.msra.mxu0 0
      %1077 = vmatprep.subr.bf16.mxu0 0
      %1078 = vmatpush1.bf16.msra.mxu0 0
      %1079 = vmatprep.subr.bf16.mxu0 0
      %1080 = vmatpush1.bf16.msra.mxu0 0
      %1081 = vmatprep.subr.bf16.mxu0 0
      %1082 = vmatpush1.bf16.msra.mxu0 0
      %1083 = vmatprep.subr.bf16.mxu0 0
      %1084 = vmatpush1.bf16.msra.mxu0 %v1067
      %1085 = vmatprep.subr.bf16.mxu0 0
      %1086 = vmatpush2.bf16.msra.mxu0 0
      %1087 = vmatprep.subr.bf16.mxu0 0
      %1088 = vmatpush2.bf16.msra.mxu0 0
      %1089 = vmatprep.subr.bf16.mxu0 0
      %1090 = vmatpush2.bf16.msra.mxu0 0
      %1091 = vmatprep.subr.bf16.mxu0 0
      %1092 = vmatpush2.bf16.msra.mxu0 0
      %1093 = vmatprep.subr.bf16.mxu0 0
      %1094 = vmatpush2.bf16.msra.mxu0 0
      %1095 = vmatprep.subr.bf16.mxu0 0
      %1096 = vmatpush2.bf16.msra.mxu0 0
      %1097 = vmatprep.subr.bf16.mxu0 0
      %1098 = vmatpush2.bf16.msra.mxu0 0
      %1099 = vmatprep.subr.bf16.mxu0 0
      %1100 = vmatpush2.bf16.msra.mxu0 0
      %1101 = vmatprep.mubr.bf16.mxu0 0
      %1102 = vmatmul.mubr.bf16.gmra.mxu0 %v1064
      %v1103 = vpop.f32.mrf.mxu0
      %v1104 = vadd.f32 0.0, %v1103
      %v1105 = vpop.f32.mrf.mxu0
      %v1106 = vpop.f32.mrf.mxu0
      %v1107 = vadd.f32 0.0, %v1106
      %v1108 = vpop.f32.mrf.mxu0
      %1109 = vdwg.mxu0
      %v1110 = vpack.c.bf16 %v1107, %v1104
      %1111 = vrot.lane.b32.xlu0 %v877, 120
      %v1112 = vpop.permute.xlu0 %1111
      %1113 = vrot.lane.b32.xlu0 %v878, 120
      %v1114 = vpop.permute.xlu0 %1113
      %v1116 = vsel %vm607, %v1110, 0
      %v1119 = vsel %vm607, %v1112, 0
      %v1122 = vsel %vm607, %v1114, 0
      %1124 = vmatprep.subr.bf16.mxu0 0
      %1125 = vmatpush1.bf16.xpose.msra.mxu0 0
      %1126 = vmatprep.subr.bf16.mxu0 0
      %1127 = vmatpush1.bf16.xpose.msra.mxu0 0
      %1128 = vmatprep.subr.bf16.mxu0 0
      %1129 = vmatpush1.bf16.xpose.msra.mxu0 0
      %1130 = vmatprep.subr.bf16.mxu0 0
      %1131 = vmatpush1.bf16.xpose.msra.mxu0 0
      %1132 = vmatprep.subr.bf16.mxu0 0
      %1133 = vmatpush1.bf16.xpose.msra.mxu0 0
      %1134 = vmatprep.subr.bf16.mxu0 0
      %1135 = vmatpush1.bf16.xpose.msra.mxu0 0
      %1136 = vmatprep.subr.bf16.mxu0 0
      %1137 = vmatpush1.bf16.xpose.msra.mxu0 %v1122
      %1138 = vmatprep.subr.bf16.mxu0 0
      %1139 = vmatpush1.bf16.xpose.msra.mxu0 %v1119
      %1140 = vmatprep.subr.bf16.mxu0 0
      %1141 = vmatpush2.bf16.xpose.msra.mxu0 0
      %1142 = vmatprep.subr.bf16.mxu0 0
      %1143 = vmatpush2.bf16.xpose.msra.mxu0 0
      %1144 = vmatprep.subr.bf16.mxu0 0
      %1145 = vmatpush2.bf16.xpose.msra.mxu0 0
      %1146 = vmatprep.subr.bf16.mxu0 0
      %1147 = vmatpush2.bf16.xpose.msra.mxu0 0
      %1148 = vmatprep.subr.bf16.mxu0 0
      %1149 = vmatpush2.bf16.xpose.msra.mxu0 0
      %1150 = vmatprep.subr.bf16.mxu0 0
      %1151 = vmatpush2.bf16.xpose.msra.mxu0 0
      %1152 = vmatprep.subr.bf16.mxu0 0
      %1153 = vmatpush2.bf16.xpose.msra.mxu0 0
      %1154 = vmatprep.subr.bf16.mxu0 0
      %1155 = vmatpush2.bf16.xpose.msra.mxu0 0
      %1156 = vmatprep.mubr.bf16.mxu0 0
      %1157 = vmatmul.mubr.bf16.gmra.mxu0 %v1116
      %v1158 = vpop.f32.mrf.mxu0
      %v1159 = vadd.f32 0.0, %v1158
      %v1160 = vpop.f32.mrf.mxu0
      %v1161 = vpop.f32.mrf.mxu0
      %v1162 = vadd.f32 0.0, %v1161
      %v1163 = vpop.f32.mrf.mxu0
      %1164 = vdwg.mxu0
      %v1165 = vadd.f32 %v977, %v1159
      %v1166 = vadd.f32 %v980, %v1162
      %1167 = vrot.lane.b32.xlu0 %v603, 116
      %v1168 = vpop.permute.xlu0 %1167
      %1169 = vrot.lane.b32.xlu0 %v603, 84
      %v1170 = vpop.permute.xlu0 %1169
      %v1172 = vsel %vm607, %v1168, 0
      %v1175 = vsel %vm607, %v1170, 0
      %1177 = vmatprep.subr.bf16.mxu0 0
      %1178 = vmatpush1.bf16.xpose.msra.mxu0 0
      %1179 = vmatprep.subr.bf16.mxu0 0
      %1180 = vmatpush1.bf16.xpose.msra.mxu0 0
      %1181 = vmatprep.subr.bf16.mxu0 0
      %1182 = vmatpush1.bf16.xpose.msra.mxu0 0
      %1183 = vmatprep.subr.bf16.mxu0 0
      %1184 = vmatpush1.bf16.xpose.msra.mxu0 0
      %1185 = vmatprep.subr.bf16.mxu0 0
      %1186 = vmatpush1.bf16.xpose.msra.mxu0 0
      %1187 = vmatprep.subr.bf16.mxu0 0
      %1188 = vmatpush1.bf16.xpose.msra.mxu0 0
      %1189 = vmatprep.subr.bf16.mxu0 0
      %1190 = vmatpush1.bf16.xpose.msra.mxu0 0
      %1191 = vmatprep.subr.bf16.mxu0 0
      %1192 = vmatpush1.bf16.xpose.msra.mxu0 %v1175
      %1193 = vmatprep.subr.bf16.mxu0 0
      %1194 = vmatpush2.bf16.xpose.msra.mxu0 0
      %1195 = vmatprep.subr.bf16.mxu0 0
      %1196 = vmatpush2.bf16.xpose.msra.mxu0 0
      %1197 = vmatprep.subr.bf16.mxu0 0
      %1198 = vmatpush2.bf16.xpose.msra.mxu0 0
      %1199 = vmatprep.subr.bf16.mxu0 0
      %1200 = vmatpush2.bf16.xpose.msra.mxu0 0
      %1201 = vmatprep.subr.bf16.mxu0 0
      %1202 = vmatpush2.bf16.xpose.msra.mxu0 0
      %1203 = vmatprep.subr.bf16.mxu0 0
      %1204 = vmatpush2.bf16.xpose.msra.mxu0 0
      %1205 = vmatprep.subr.bf16.mxu0 0
      %1206 = vmatpush2.bf16.xpose.msra.mxu0 0
      %1207 = vmatprep.subr.bf16.mxu0 0
      %1208 = vmatpush2.bf16.xpose.msra.mxu0 0
      %1209 = vmatprep.mubr.bf16.mxu0 0
      %1210 = vmatmul.mubr.bf16.gmra.mxu0 %v1172
      %v1211 = vpop.f32.mrf.mxu0
      %v1212 = vadd.f32 0.0, %v1211
      %v1213 = vpop.f32.mrf.mxu0
      %v1214 = vpop.f32.mrf.mxu0
      %v1215 = vadd.f32 0.0, %v1214
      %v1216 = vpop.f32.mrf.mxu0
      %1217 = vdwg.mxu0
      %v1218 = vmul.f32 %v1212, 0.5
      %v1219 = vmul.f32 %v1215, 0.5
      %v1220 = vadd.f32 %v1218, %v661
      %v1221 = vadd.f32 %v1219, %v661
      %v1222 = vsel %vm665, %v1220, -inf
      %1223 = vmax.xlane.f32.xlu0 %v1222
      %v1224 = vpop.xlane.xlu0 %1223
      %v1225 = vsel %vm669, %v1221, -inf
      %1226 = vmax.xlane.f32.xlu0 %v1225
      %v1227 = vpop.xlane.xlu0 %1226
      %v1228 = vsub.f32 %v1220, %v1224
      %v1229 = vsub.f32 %v1221, %v1227
      %v1230 = vmul.f32 %v1228, 1.442695
      %v1231 = vpow.pop %v1230
      %v1232 = vmul.f32 %v1229, 1.442695
      %v1233 = vpow.pop %v1232
      %v1234 = vsel %vm665, %v1231, 0.0
      %1235 = vadd.xlane.f32.xlu0 %v1234
      %v1236 = vpop.xlane.xlu0 %1235
      %v1237 = vsel %vm669, %v1233, 0.0
      %1238 = vadd.xlane.f32.xlu0 %v1237
      %v1239 = vpop.xlane.xlu0 %1238
      %v1240 = vrcp.pop %v1236
      %v1241 = vrcp.pop %v1239
      %v1242 = vmul.f32 %v1231, %v1240
      %v1243 = vmul.f32 %v1233, %v1241
      %v1244 = vpack.c.bf16 %v1243, %v1242
      %1245 = vrot.lane.b32.xlu0 %v603, 52
      %v1246 = vpop.permute.xlu0 %1245
      %v1248 = vsel %vm665, %v1244, 0
      %v1251 = vsel %vm695, %v1246, 0
      %1253 = vmatprep.subr.bf16.mxu0 0
      %1254 = vmatpush1.bf16.msra.mxu0 0
      %1255 = vmatprep.subr.bf16.mxu0 0
      %1256 = vmatpush1.bf16.msra.mxu0 0
      %1257 = vmatprep.subr.bf16.mxu0 0
      %1258 = vmatpush1.bf16.msra.mxu0 0
      %1259 = vmatprep.subr.bf16.mxu0 0
      %1260 = vmatpush1.bf16.msra.mxu0 0
      %1261 = vmatprep.subr.bf16.mxu0 0
      %1262 = vmatpush1.bf16.msra.mxu0 0
      %1263 = vmatprep.subr.bf16.mxu0 0
      %1264 = vmatpush1.bf16.msra.mxu0 0
      %1265 = vmatprep.subr.bf16.mxu0 0
      %1266 = vmatpush1.bf16.msra.mxu0 0
      %1267 = vmatprep.subr.bf16.mxu0 0
      %1268 = vmatpush1.bf16.msra.mxu0 %v1251
      %1269 = vmatprep.subr.bf16.mxu0 0
      %1270 = vmatpush2.bf16.msra.mxu0 0
      %1271 = vmatprep.subr.bf16.mxu0 0
      %1272 = vmatpush2.bf16.msra.mxu0 0
      %1273 = vmatprep.subr.bf16.mxu0 0
      %1274 = vmatpush2.bf16.msra.mxu0 0
      %1275 = vmatprep.subr.bf16.mxu0 0
      %1276 = vmatpush2.bf16.msra.mxu0 0
      %1277 = vmatprep.subr.bf16.mxu0 0
      %1278 = vmatpush2.bf16.msra.mxu0 0
      %1279 = vmatprep.subr.bf16.mxu0 0
      %1280 = vmatpush2.bf16.msra.mxu0 0
      %1281 = vmatprep.subr.bf16.mxu0 0
      %1282 = vmatpush2.bf16.msra.mxu0 0
      %1283 = vmatprep.subr.bf16.mxu0 0
      %1284 = vmatpush2.bf16.msra.mxu0 0
      %1285 = vmatprep.mubr.bf16.mxu0 0
      %1286 = vmatmul.mubr.bf16.gmra.mxu0 %v1248
      %v1287 = vpop.f32.mrf.mxu0
      %v1288 = vadd.f32 0.0, %v1287
      %v1289 = vpop.f32.mrf.mxu0
      %v1290 = vpop.f32.mrf.mxu0
      %v1291 = vadd.f32 0.0, %v1290
      %v1292 = vpop.f32.mrf.mxu0
      %1293 = vdwg.mxu0
      %v1294 = vpack.c.bf16 %v1291, %v1288
      %1295 = vrot.lane.b32.xlu0 %v877, 116
      %v1296 = vpop.permute.xlu0 %1295
      %1297 = vrot.lane.b32.xlu0 %v878, 116
      %v1298 = vpop.permute.xlu0 %1297
      %v1300 = vsel %vm607, %v1294, 0
      %v1303 = vsel %vm607, %v1296, 0
      %v1306 = vsel %vm607, %v1298, 0
      %1308 = vmatprep.subr.bf16.mxu0 0
      %1309 = vmatpush1.bf16.xpose.msra.mxu0 0
      %1310 = vmatprep.subr.bf16.mxu0 0
      %1311 = vmatpush1.bf16.xpose.msra.mxu0 0
      %1312 = vmatprep.subr.bf16.mxu0 0
      %1313 = vmatpush1.bf16.xpose.msra.mxu0 0
      %1314 = vmatprep.subr.bf16.mxu0 0
      %1315 = vmatpush1.bf16.xpose.msra.mxu0 0
      %1316 = vmatprep.subr.bf16.mxu0 0
      %1317 = vmatpush1.bf16.xpose.msra.mxu0 0
      %1318 = vmatprep.subr.bf16.mxu0 0
      %1319 = vmatpush1.bf16.xpose.msra.mxu0 0
      %1320 = vmatprep.subr.bf16.mxu0 0
      %1321 = vmatpush1.bf16.xpose.msra.mxu0 %v1306
      %1322 = vmatprep.subr.bf16.mxu0 0
      %1323 = vmatpush1.bf16.xpose.msra.mxu0 %v1303
      %1324 = vmatprep.subr.bf16.mxu0 0
      %1325 = vmatpush2.bf16.xpose.msra.mxu0 0
      %1326 = vmatprep.subr.bf16.mxu0 0
      %1327 = vmatpush2.bf16.xpose.msra.mxu0 0
      %1328 = vmatprep.subr.bf16.mxu0 0
      %1329 = vmatpush2.bf16.xpose.msra.mxu0 0
      %1330 = vmatprep.subr.bf16.mxu0 0
      %1331 = vmatpush2.bf16.xpose.msra.mxu0 0
      %1332 = vmatprep.subr.bf16.mxu0 0
      %1333 = vmatpush2.bf16.xpose.msra.mxu0 0
      %1334 = vmatprep.subr.bf16.mxu0 0
      %1335 = vmatpush2.bf16.xpose.msra.mxu0 0
      %1336 = vmatprep.subr.bf16.mxu0 0
      %1337 = vmatpush2.bf16.xpose.msra.mxu0 0
      %1338 = vmatprep.subr.bf16.mxu0 0
      %1339 = vmatpush2.bf16.xpose.msra.mxu0 0
      %1340 = vmatprep.mubr.bf16.mxu0 0
      %1341 = vmatmul.mubr.bf16.gmra.mxu0 %v1300
      %v1342 = vpop.f32.mrf.mxu0
      %v1343 = vadd.f32 0.0, %v1342
      %v1344 = vpop.f32.mrf.mxu0
      %v1345 = vpop.f32.mrf.mxu0
      %v1346 = vadd.f32 0.0, %v1345
      %v1347 = vpop.f32.mrf.mxu0
      %1348 = vdwg.mxu0
      %v1349 = vadd.f32 %v1165, %v1343
      %v1350 = vadd.f32 %v1166, %v1346
      %1351 = vrot.lane.b32.xlu0 %v603, 112
      %v1352 = vpop.permute.xlu0 %1351
      %1353 = vrot.lane.b32.xlu0 %v603, 80
      %v1354 = vpop.permute.xlu0 %1353
      %v1356 = vsel %vm607, %v1352, 0
      %v1359 = vsel %vm607, %v1354, 0
      %1361 = vmatprep.subr.bf16.mxu0 0
      %1362 = vmatpush1.bf16.xpose.msra.mxu0 0
      %1363 = vmatprep.subr.bf16.mxu0 0
      %1364 = vmatpush1.bf16.xpose.msra.mxu0 0
      %1365 = vmatprep.subr.bf16.mxu0 0
      %1366 = vmatpush1.bf16.xpose.msra.mxu0 0
      %1367 = vmatprep.subr.bf16.mxu0 0
      %1368 = vmatpush1.bf16.xpose.msra.mxu0 0
      %1369 = vmatprep.subr.bf16.mxu0 0
      %1370 = vmatpush1.bf16.xpose.msra.mxu0 0
      %1371 = vmatprep.subr.bf16.mxu0 0
      %1372 = vmatpush1.bf16.xpose.msra.mxu0 0
      %1373 = vmatprep.subr.bf16.mxu0 0
      %1374 = vmatpush1.bf16.xpose.msra.mxu0 0
      %1375 = vmatprep.subr.bf16.mxu0 0
      %1376 = vmatpush1.bf16.xpose.msra.mxu0 %v1359
      %1377 = vmatprep.subr.bf16.mxu0 0
      %1378 = vmatpush2.bf16.xpose.msra.mxu0 0
      %1379 = vmatprep.subr.bf16.mxu0 0
      %1380 = vmatpush2.bf16.xpose.msra.mxu0 0
      %1381 = vmatprep.subr.bf16.mxu0 0
      %1382 = vmatpush2.bf16.xpose.msra.mxu0 0
      %1383 = vmatprep.subr.bf16.mxu0 0
      %1384 = vmatpush2.bf16.xpose.msra.mxu0 0
      %1385 = vmatprep.subr.bf16.mxu0 0
      %1386 = vmatpush2.bf16.xpose.msra.mxu0 0
      %1387 = vmatprep.subr.bf16.mxu0 0
      %1388 = vmatpush2.bf16.xpose.msra.mxu0 0
      %1389 = vmatprep.subr.bf16.mxu0 0
      %1390 = vmatpush2.bf16.xpose.msra.mxu0 0
      %1391 = vmatprep.subr.bf16.mxu0 0
      %1392 = vmatpush2.bf16.xpose.msra.mxu0 0
      %1393 = vmatprep.mubr.bf16.mxu0 0
      %1394 = vmatmul.mubr.bf16.gmra.mxu0 %v1356
      %v1395 = vpop.f32.mrf.mxu0
      %v1396 = vadd.f32 0.0, %v1395
      %v1397 = vpop.f32.mrf.mxu0
      %v1398 = vpop.f32.mrf.mxu0
      %v1399 = vadd.f32 0.0, %v1398
      %v1400 = vpop.f32.mrf.mxu0
      %1401 = vdwg.mxu0
      %v1402 = vmul.f32 %v1396, 0.5
      %v1403 = vmul.f32 %v1399, 0.5
      %v1404 = vadd.f32 %v1402, %v661
      %v1405 = vadd.f32 %v1403, %v661
      %v1406 = vsel %vm665, %v1404, -inf
      %1407 = vmax.xlane.f32.xlu0 %v1406
      %v1408 = vpop.xlane.xlu0 %1407
      %v1409 = vsel %vm669, %v1405, -inf
      %1410 = vmax.xlane.f32.xlu0 %v1409
      %v1411 = vpop.xlane.xlu0 %1410
      %v1412 = vsub.f32 %v1404, %v1408
      %v1413 = vsub.f32 %v1405, %v1411
      %v1414 = vmul.f32 %v1412, 1.442695
      %v1415 = vpow.pop %v1414
      %v1416 = vmul.f32 %v1413, 1.442695
      %v1417 = vpow.pop %v1416
      %v1418 = vsel %vm665, %v1415, 0.0
      %1419 = vadd.xlane.f32.xlu0 %v1418
      %v1420 = vpop.xlane.xlu0 %1419
      %v1421 = vsel %vm669, %v1417, 0.0
      %1422 = vadd.xlane.f32.xlu0 %v1421
      %v1423 = vpop.xlane.xlu0 %1422
      %v1424 = vrcp.pop %v1420
      %v1425 = vrcp.pop %v1423
      %v1426 = vmul.f32 %v1415, %v1424
      %v1427 = vmul.f32 %v1417, %v1425
      %v1428 = vpack.c.bf16 %v1427, %v1426
      %1429 = vrot.lane.b32.xlu0 %v603, 48
      %v1430 = vpop.permute.xlu0 %1429
      %v1432 = vsel %vm665, %v1428, 0
      %v1435 = vsel %vm695, %v1430, 0
      %1437 = vmatprep.subr.bf16.mxu0 0
      %1438 = vmatpush1.bf16.msra.mxu0 0
      %1439 = vmatprep.subr.bf16.mxu0 0
      %1440 = vmatpush1.bf16.msra.mxu0 0
      %1441 = vmatprep.subr.bf16.mxu0 0
      %1442 = vmatpush1.bf16.msra.mxu0 0
      %1443 = vmatprep.subr.bf16.mxu0 0
      %1444 = vmatpush1.bf16.msra.mxu0 0
      %1445 = vmatprep.subr.bf16.mxu0 0
      %1446 = vmatpush1.bf16.msra.mxu0 0
      %1447 = vmatprep.subr.bf16.mxu0 0
      %1448 = vmatpush1.bf16.msra.mxu0 0
      %1449 = vmatprep.subr.bf16.mxu0 0
      %1450 = vmatpush1.bf16.msra.mxu0 0
      %1451 = vmatprep.subr.bf16.mxu0 0
      %1452 = vmatpush1.bf16.msra.mxu0 %v1435
      %1453 = vmatprep.subr.bf16.mxu0 0
      %1454 = vmatpush2.bf16.msra.mxu0 0
      %1455 = vmatprep.subr.bf16.mxu0 0
      %1456 = vmatpush2.bf16.msra.mxu0 0
      %1457 = vmatprep.subr.bf16.mxu0 0
      %1458 = vmatpush2.bf16.msra.mxu0 0
      %1459 = vmatprep.subr.bf16.mxu0 0
      %1460 = vmatpush2.bf16.msra.mxu0 0
      %1461 = vmatprep.subr.bf16.mxu0 0
      %1462 = vmatpush2.bf16.msra.mxu0 0
      %1463 = vmatprep.subr.bf16.mxu0 0
      %1464 = vmatpush2.bf16.msra.mxu0 0
      %1465 = vmatprep.subr.bf16.mxu0 0
      %1466 = vmatpush2.bf16.msra.mxu0 0
      %1467 = vmatprep.subr.bf16.mxu0 0
      %1468 = vmatpush2.bf16.msra.mxu0 0
      %1469 = vmatprep.mubr.bf16.mxu0 0
      %1470 = vmatmul.mubr.bf16.gmra.mxu0 %v1432
      %v1471 = vpop.f32.mrf.mxu0
      %v1472 = vadd.f32 0.0, %v1471
      %v1473 = vpop.f32.mrf.mxu0
      %v1474 = vpop.f32.mrf.mxu0
      %v1475 = vadd.f32 0.0, %v1474
      %v1476 = vpop.f32.mrf.mxu0
      %1477 = vdwg.mxu0
      %v1478 = vpack.c.bf16 %v1475, %v1472
      %1479 = vrot.lane.b32.xlu0 %v877, 112
      %v1480 = vpop.permute.xlu0 %1479
      %1481 = vrot.lane.b32.xlu0 %v878, 112
      %v1482 = vpop.permute.xlu0 %1481
      %v1484 = vsel %vm607, %v1478, 0
      %v1487 = vsel %vm607, %v1480, 0
      %v1490 = vsel %vm607, %v1482, 0
      %1492 = vmatprep.subr.bf16.mxu0 0
      %1493 = vmatpush1.bf16.xpose.msra.mxu0 0
      %1494 = vmatprep.subr.bf16.mxu0 0
      %1495 = vmatpush1.bf16.xpose.msra.mxu0 0
      %1496 = vmatprep.subr.bf16.mxu0 0
      %1497 = vmatpush1.bf16.xpose.msra.mxu0 0
      %1498 = vmatprep.subr.bf16.mxu0 0
      %1499 = vmatpush1.bf16.xpose.msra.mxu0 0
      %1500 = vmatprep.subr.bf16.mxu0 0
      %1501 = vmatpush1.bf16.xpose.msra.mxu0 0
      %1502 = vmatprep.subr.bf16.mxu0 0
      %1503 = vmatpush1.bf16.xpose.msra.mxu0 0
      %1504 = vmatprep.subr.bf16.mxu0 0
      %1505 = vmatpush1.bf16.xpose.msra.mxu0 %v1490
      %1506 = vmatprep.subr.bf16.mxu0 0
      %1507 = vmatpush1.bf16.xpose.msra.mxu0 %v1487
      %1508 = vmatprep.subr.bf16.mxu0 0
      %1509 = vmatpush2.bf16.xpose.msra.mxu0 0
      %1510 = vmatprep.subr.bf16.mxu0 0
      %1511 = vmatpush2.bf16.xpose.msra.mxu0 0
      %1512 = vmatprep.subr.bf16.mxu0 0
      %1513 = vmatpush2.bf16.xpose.msra.mxu0 0
      %1514 = vmatprep.subr.bf16.mxu0 0
      %1515 = vmatpush2.bf16.xpose.msra.mxu0 0
      %1516 = vmatprep.subr.bf16.mxu0 0
      %1517 = vmatpush2.bf16.xpose.msra.mxu0 0
      %1518 = vmatprep.subr.bf16.mxu0 0
      %1519 = vmatpush2.bf16.xpose.msra.mxu0 0
      %1520 = vmatprep.subr.bf16.mxu0 0
      %1521 = vmatpush2.bf16.xpose.msra.mxu0 0
      %1522 = vmatprep.subr.bf16.mxu0 0
      %1523 = vmatpush2.bf16.xpose.msra.mxu0 0
      %1524 = vmatprep.mubr.bf16.mxu0 0
      %1525 = vmatmul.mubr.bf16.gmra.mxu0 %v1484
      %v1526 = vpop.f32.mrf.mxu0
      %v1527 = vadd.f32 0.0, %v1526
      %v1528 = vpop.f32.mrf.mxu0
      %v1529 = vpop.f32.mrf.mxu0
      %v1530 = vadd.f32 0.0, %v1529
      %v1531 = vpop.f32.mrf.mxu0
      %1532 = vdwg.mxu0
      %v1533 = vadd.f32 %v1349, %v1527
      %v1534 = vadd.f32 %v1350, %v1530
      %1535 = vrot.lane.b32.xlu0 %v603, 108
      %v1536 = vpop.permute.xlu0 %1535
      %1537 = vrot.lane.b32.xlu0 %v603, 76
      %v1538 = vpop.permute.xlu0 %1537
      %v1540 = vsel %vm607, %v1536, 0
      %v1543 = vsel %vm607, %v1538, 0
      %1545 = vmatprep.subr.bf16.mxu0 0
      %1546 = vmatpush1.bf16.xpose.msra.mxu0 0
      %1547 = vmatprep.subr.bf16.mxu0 0
      %1548 = vmatpush1.bf16.xpose.msra.mxu0 0
      %1549 = vmatprep.subr.bf16.mxu0 0
      %1550 = vmatpush1.bf16.xpose.msra.mxu0 0
      %1551 = vmatprep.subr.bf16.mxu0 0
      %1552 = vmatpush1.bf16.xpose.msra.mxu0 0
      %1553 = vmatprep.subr.bf16.mxu0 0
      %1554 = vmatpush1.bf16.xpose.msra.mxu0 0
      %1555 = vmatprep.subr.bf16.mxu0 0
      %1556 = vmatpush1.bf16.xpose.msra.mxu0 0
      %1557 = vmatprep.subr.bf16.mxu0 0
      %1558 = vmatpush1.bf16.xpose.msra.mxu0 0
      %1559 = vmatprep.subr.bf16.mxu0 0
      %1560 = vmatpush1.bf16.xpose.msra.mxu0 %v1543
      %1561 = vmatprep.subr.bf16.mxu0 0
      %1562 = vmatpush2.bf16.xpose.msra.mxu0 0
      %1563 = vmatprep.subr.bf16.mxu0 0
      %1564 = vmatpush2.bf16.xpose.msra.mxu0 0
      %1565 = vmatprep.subr.bf16.mxu0 0
      %1566 = vmatpush2.bf16.xpose.msra.mxu0 0
      %1567 = vmatprep.subr.bf16.mxu0 0
      %1568 = vmatpush2.bf16.xpose.msra.mxu0 0
      %1569 = vmatprep.subr.bf16.mxu0 0
      %1570 = vmatpush2.bf16.xpose.msra.mxu0 0
      %1571 = vmatprep.subr.bf16.mxu0 0
      %1572 = vmatpush2.bf16.xpose.msra.mxu0 0
      %1573 = vmatprep.subr.bf16.mxu0 0
      %1574 = vmatpush2.bf16.xpose.msra.mxu0 0
      %1575 = vmatprep.subr.bf16.mxu0 0
      %1576 = vmatpush2.bf16.xpose.msra.mxu0 0
      %1577 = vmatprep.mubr.bf16.mxu0 0
      %1578 = vmatmul.mubr.bf16.gmra.mxu0 %v1540
      %v1579 = vpop.f32.mrf.mxu0
      %v1580 = vadd.f32 0.0, %v1579
      %v1581 = vpop.f32.mrf.mxu0
      %v1582 = vpop.f32.mrf.mxu0
      %v1583 = vadd.f32 0.0, %v1582
      %v1584 = vpop.f32.mrf.mxu0
      %1585 = vdwg.mxu0
      %v1586 = vmul.f32 %v1580, 0.5
      %v1587 = vmul.f32 %v1583, 0.5
      %v1588 = vadd.f32 %v1586, %v661
      %v1589 = vadd.f32 %v1587, %v661
      %v1590 = vsel %vm665, %v1588, -inf
      %1591 = vmax.xlane.f32.xlu0 %v1590
      %v1592 = vpop.xlane.xlu0 %1591
      %v1593 = vsel %vm669, %v1589, -inf
      %1594 = vmax.xlane.f32.xlu0 %v1593
      %v1595 = vpop.xlane.xlu0 %1594
      %v1596 = vsub.f32 %v1588, %v1592
      %v1597 = vsub.f32 %v1589, %v1595
      %v1598 = vmul.f32 %v1596, 1.442695
      %v1599 = vpow.pop %v1598
      %v1600 = vmul.f32 %v1597, 1.442695
      %v1601 = vpow.pop %v1600
      %v1602 = vsel %vm665, %v1599, 0.0
      %1603 = vadd.xlane.f32.xlu0 %v1602
      %v1604 = vpop.xlane.xlu0 %1603
      %v1605 = vsel %vm669, %v1601, 0.0
      %1606 = vadd.xlane.f32.xlu0 %v1605
      %v1607 = vpop.xlane.xlu0 %1606
      %v1608 = vrcp.pop %v1604
      %v1609 = vrcp.pop %v1607
      %v1610 = vmul.f32 %v1599, %v1608
      %v1611 = vmul.f32 %v1601, %v1609
      %v1612 = vpack.c.bf16 %v1611, %v1610
      %1613 = vrot.lane.b32.xlu0 %v603, 44
      %v1614 = vpop.permute.xlu0 %1613
      %v1616 = vsel %vm665, %v1612, 0
      %v1619 = vsel %vm695, %v1614, 0
      %1621 = vmatprep.subr.bf16.mxu0 0
      %1622 = vmatpush1.bf16.msra.mxu0 0
      %1623 = vmatprep.subr.bf16.mxu0 0
      %1624 = vmatpush1.bf16.msra.mxu0 0
      %1625 = vmatprep.subr.bf16.mxu0 0
      %1626 = vmatpush1.bf16.msra.mxu0 0
      %1627 = vmatprep.subr.bf16.mxu0 0
      %1628 = vmatpush1.bf16.msra.mxu0 0
      %1629 = vmatprep.subr.bf16.mxu0 0
      %1630 = vmatpush1.bf16.msra.mxu0 0
      %1631 = vmatprep.subr.bf16.mxu0 0
      %1632 = vmatpush1.bf16.msra.mxu0 0
      %1633 = vmatprep.subr.bf16.mxu0 0
      %1634 = vmatpush1.bf16.msra.mxu0 0
      %1635 = vmatprep.subr.bf16.mxu0 0
      %1636 = vmatpush1.bf16.msra.mxu0 %v1619
      %1637 = vmatprep.subr.bf16.mxu0 0
      %1638 = vmatpush2.bf16.msra.mxu0 0
      %1639 = vmatprep.subr.bf16.mxu0 0
      %1640 = vmatpush2.bf16.msra.mxu0 0
      %1641 = vmatprep.subr.bf16.mxu0 0
      %1642 = vmatpush2.bf16.msra.mxu0 0
      %1643 = vmatprep.subr.bf16.mxu0 0
      %1644 = vmatpush2.bf16.msra.mxu0 0
      %1645 = vmatprep.subr.bf16.mxu0 0
      %1646 = vmatpush2.bf16.msra.mxu0 0
      %1647 = vmatprep.subr.bf16.mxu0 0
      %1648 = vmatpush2.bf16.msra.mxu0 0
      %1649 = vmatprep.subr.bf16.mxu0 0
      %1650 = vmatpush2.bf16.msra.mxu0 0
      %1651 = vmatprep.subr.bf16.mxu0 0
      %1652 = vmatpush2.bf16.msra.mxu0 0
      %1653 = vmatprep.mubr.bf16.mxu0 0
      %1654 = vmatmul.mubr.bf16.gmra.mxu0 %v1616
      %v1655 = vpop.f32.mrf.mxu0
      %v1656 = vadd.f32 0.0, %v1655
      %v1657 = vpop.f32.mrf.mxu0
      %v1658 = vpop.f32.mrf.mxu0
      %v1659 = vadd.f32 0.0, %v1658
      %v1660 = vpop.f32.mrf.mxu0
      %1661 = vdwg.mxu0
      %v1662 = vpack.c.bf16 %v1659, %v1656
      %1663 = vrot.lane.b32.xlu0 %v877, 108
      %v1664 = vpop.permute.xlu0 %1663
      %1665 = vrot.lane.b32.xlu0 %v878, 108
      %v1666 = vpop.permute.xlu0 %1665
      %v1668 = vsel %vm607, %v1662, 0
      %v1671 = vsel %vm607, %v1664, 0
      %v1674 = vsel %vm607, %v1666, 0
      %1676 = vmatprep.subr.bf16.mxu0 0
      %1677 = vmatpush1.bf16.xpose.msra.mxu0 0
      %1678 = vmatprep.subr.bf16.mxu0 0
      %1679 = vmatpush1.bf16.xpose.msra.mxu0 0
      %1680 = vmatprep.subr.bf16.mxu0 0
      %1681 = vmatpush1.bf16.xpose.msra.mxu0 0
      %1682 = vmatprep.subr.bf16.mxu0 0
      %1683 = vmatpush1.bf16.xpose.msra.mxu0 0
      %1684 = vmatprep.subr.bf16.mxu0 0
      %1685 = vmatpush1.bf16.xpose.msra.mxu0 0
      %1686 = vmatprep.subr.bf16.mxu0 0
      %1687 = vmatpush1.bf16.xpose.msra.mxu0 0
      %1688 = vmatprep.subr.bf16.mxu0 0
      %1689 = vmatpush1.bf16.xpose.msra.mxu0 %v1674
      %1690 = vmatprep.subr.bf16.mxu0 0
      %1691 = vmatpush1.bf16.xpose.msra.mxu0 %v1671
      %1692 = vmatprep.subr.bf16.mxu0 0
      %1693 = vmatpush2.bf16.xpose.msra.mxu0 0
      %1694 = vmatprep.subr.bf16.mxu0 0
      %1695 = vmatpush2.bf16.xpose.msra.mxu0 0
      %1696 = vmatprep.subr.bf16.mxu0 0
      %1697 = vmatpush2.bf16.xpose.msra.mxu0 0
      %1698 = vmatprep.subr.bf16.mxu0 0
      %1699 = vmatpush2.bf16.xpose.msra.mxu0 0
      %1700 = vmatprep.subr.bf16.mxu0 0
      %1701 = vmatpush2.bf16.xpose.msra.mxu0 0
      %1702 = vmatprep.subr.bf16.mxu0 0
      %1703 = vmatpush2.bf16.xpose.msra.mxu0 0
      %1704 = vmatprep.subr.bf16.mxu0 0
      %1705 = vmatpush2.bf16.xpose.msra.mxu0 0
      %1706 = vmatprep.subr.bf16.mxu0 0
      %1707 = vmatpush2.bf16.xpose.msra.mxu0 0
      %1708 = vmatprep.mubr.bf16.mxu0 0
      %1709 = vmatmul.mubr.bf16.gmra.mxu0 %v1668
      %v1710 = vpop.f32.mrf.mxu0
      %v1711 = vadd.f32 0.0, %v1710
      %v1712 = vpop.f32.mrf.mxu0
      %v1713 = vpop.f32.mrf.mxu0
      %v1714 = vadd.f32 0.0, %v1713
      %v1715 = vpop.f32.mrf.mxu0
      %1716 = vdwg.mxu0
      %v1717 = vadd.f32 %v1533, %v1711
      %v1718 = vadd.f32 %v1534, %v1714
      %1719 = vrot.lane.b32.xlu0 %v603, 104
      %v1720 = vpop.permute.xlu0 %1719
      %1721 = vrot.lane.b32.xlu0 %v603, 72
      %v1722 = vpop.permute.xlu0 %1721
      %v1724 = vsel %vm607, %v1720, 0
      %v1727 = vsel %vm607, %v1722, 0
      %1729 = vmatprep.subr.bf16.mxu0 0
      %1730 = vmatpush1.bf16.xpose.msra.mxu0 0
      %1731 = vmatprep.subr.bf16.mxu0 0
      %1732 = vmatpush1.bf16.xpose.msra.mxu0 0
      %1733 = vmatprep.subr.bf16.mxu0 0
      %1734 = vmatpush1.bf16.xpose.msra.mxu0 0
      %1735 = vmatprep.subr.bf16.mxu0 0
      %1736 = vmatpush1.bf16.xpose.msra.mxu0 0
      %1737 = vmatprep.subr.bf16.mxu0 0
      %1738 = vmatpush1.bf16.xpose.msra.mxu0 0
      %1739 = vmatprep.subr.bf16.mxu0 0
      %1740 = vmatpush1.bf16.xpose.msra.mxu0 0
      %1741 = vmatprep.subr.bf16.mxu0 0
      %1742 = vmatpush1.bf16.xpose.msra.mxu0 0
      %1743 = vmatprep.subr.bf16.mxu0 0
      %1744 = vmatpush1.bf16.xpose.msra.mxu0 %v1727
      %1745 = vmatprep.subr.bf16.mxu0 0
      %1746 = vmatpush2.bf16.xpose.msra.mxu0 0
      %1747 = vmatprep.subr.bf16.mxu0 0
      %1748 = vmatpush2.bf16.xpose.msra.mxu0 0
      %1749 = vmatprep.subr.bf16.mxu0 0
      %1750 = vmatpush2.bf16.xpose.msra.mxu0 0
      %1751 = vmatprep.subr.bf16.mxu0 0
      %1752 = vmatpush2.bf16.xpose.msra.mxu0 0
      %1753 = vmatprep.subr.bf16.mxu0 0
      %1754 = vmatpush2.bf16.xpose.msra.mxu0 0
      %1755 = vmatprep.subr.bf16.mxu0 0
      %1756 = vmatpush2.bf16.xpose.msra.mxu0 0
      %1757 = vmatprep.subr.bf16.mxu0 0
      %1758 = vmatpush2.bf16.xpose.msra.mxu0 0
      %1759 = vmatprep.subr.bf16.mxu0 0
      %1760 = vmatpush2.bf16.xpose.msra.mxu0 0
      %1761 = vmatprep.mubr.bf16.mxu0 0
      %1762 = vmatmul.mubr.bf16.gmra.mxu0 %v1724
      %v1763 = vpop.f32.mrf.mxu0
      %v1764 = vadd.f32 0.0, %v1763
      %v1765 = vpop.f32.mrf.mxu0
      %v1766 = vpop.f32.mrf.mxu0
      %v1767 = vadd.f32 0.0, %v1766
      %v1768 = vpop.f32.mrf.mxu0
      %1769 = vdwg.mxu0
      %v1770 = vmul.f32 %v1764, 0.5
      %v1771 = vmul.f32 %v1767, 0.5
      %v1772 = vadd.f32 %v1770, %v661
      %v1773 = vadd.f32 %v1771, %v661
      %v1774 = vsel %vm665, %v1772, -inf
      %1775 = vmax.xlane.f32.xlu0 %v1774
      %v1776 = vpop.xlane.xlu0 %1775
      %v1777 = vsel %vm669, %v1773, -inf
      %1778 = vmax.xlane.f32.xlu0 %v1777
      %v1779 = vpop.xlane.xlu0 %1778
      %v1780 = vsub.f32 %v1772, %v1776
      %v1781 = vsub.f32 %v1773, %v1779
      %v1782 = vmul.f32 %v1780, 1.442695
      %v1783 = vpow.pop %v1782
      %v1784 = vmul.f32 %v1781, 1.442695
      %v1785 = vpow.pop %v1784
      %v1786 = vsel %vm665, %v1783, 0.0
      %1787 = vadd.xlane.f32.xlu0 %v1786
      %v1788 = vpop.xlane.xlu0 %1787
      %v1789 = vsel %vm669, %v1785, 0.0
      %1790 = vadd.xlane.f32.xlu0 %v1789
      %v1791 = vpop.xlane.xlu0 %1790
      %v1792 = vrcp.pop %v1788
      %v1793 = vrcp.pop %v1791
      %v1794 = vmul.f32 %v1783, %v1792
      %v1795 = vmul.f32 %v1785, %v1793
      %v1796 = vpack.c.bf16 %v1795, %v1794
      %1797 = vrot.lane.b32.xlu0 %v603, 40
      %v1798 = vpop.permute.xlu0 %1797
      %v1800 = vsel %vm665, %v1796, 0
      %v1803 = vsel %vm695, %v1798, 0
      %1805 = vmatprep.subr.bf16.mxu0 0
      %1806 = vmatpush1.bf16.msra.mxu0 0
      %1807 = vmatprep.subr.bf16.mxu0 0
      %1808 = vmatpush1.bf16.msra.mxu0 0
      %1809 = vmatprep.subr.bf16.mxu0 0
      %1810 = vmatpush1.bf16.msra.mxu0 0
      %1811 = vmatprep.subr.bf16.mxu0 0
      %1812 = vmatpush1.bf16.msra.mxu0 0
      %1813 = vmatprep.subr.bf16.mxu0 0
      %1814 = vmatpush1.bf16.msra.mxu0 0
      %1815 = vmatprep.subr.bf16.mxu0 0
      %1816 = vmatpush1.bf16.msra.mxu0 0
      %1817 = vmatprep.subr.bf16.mxu0 0
      %1818 = vmatpush1.bf16.msra.mxu0 0
      %1819 = vmatprep.subr.bf16.mxu0 0
      %1820 = vmatpush1.bf16.msra.mxu0 %v1803
      %1821 = vmatprep.subr.bf16.mxu0 0
      %1822 = vmatpush2.bf16.msra.mxu0 0
      %1823 = vmatprep.subr.bf16.mxu0 0
      %1824 = vmatpush2.bf16.msra.mxu0 0
      %1825 = vmatprep.subr.bf16.mxu0 0
      %1826 = vmatpush2.bf16.msra.mxu0 0
      %1827 = vmatprep.subr.bf16.mxu0 0
      %1828 = vmatpush2.bf16.msra.mxu0 0
      %1829 = vmatprep.subr.bf16.mxu0 0
      %1830 = vmatpush2.bf16.msra.mxu0 0
      %1831 = vmatprep.subr.bf16.mxu0 0
      %1832 = vmatpush2.bf16.msra.mxu0 0
      %1833 = vmatprep.subr.bf16.mxu0 0
      %1834 = vmatpush2.bf16.msra.mxu0 0
      %1835 = vmatprep.subr.bf16.mxu0 0
      %1836 = vmatpush2.bf16.msra.mxu0 0
      %1837 = vmatprep.mubr.bf16.mxu0 0
      %1838 = vmatmul.mubr.bf16.gmra.mxu0 %v1800
      %v1839 = vpop.f32.mrf.mxu0
      %v1840 = vadd.f32 0.0, %v1839
      %v1841 = vpop.f32.mrf.mxu0
      %v1842 = vpop.f32.mrf.mxu0
      %v1843 = vadd.f32 0.0, %v1842
      %v1844 = vpop.f32.mrf.mxu0
      %1845 = vdwg.mxu0
      %v1846 = vpack.c.bf16 %v1843, %v1840
      %1847 = vrot.lane.b32.xlu0 %v877, 104
      %v1848 = vpop.permute.xlu0 %1847
      %1849 = vrot.lane.b32.xlu0 %v878, 104
      %v1850 = vpop.permute.xlu0 %1849
      %v1852 = vsel %vm607, %v1846, 0
      %v1855 = vsel %vm607, %v1848, 0
      %v1858 = vsel %vm607, %v1850, 0
      %1860 = vmatprep.subr.bf16.mxu0 0
      %1861 = vmatpush1.bf16.xpose.msra.mxu0 0
      %1862 = vmatprep.subr.bf16.mxu0 0
      %1863 = vmatpush1.bf16.xpose.msra.mxu0 0
      %1864 = vmatprep.subr.bf16.mxu0 0
      %1865 = vmatpush1.bf16.xpose.msra.mxu0 0
      %1866 = vmatprep.subr.bf16.mxu0 0
      %1867 = vmatpush1.bf16.xpose.msra.mxu0 0
      %1868 = vmatprep.subr.bf16.mxu0 0
      %1869 = vmatpush1.bf16.xpose.msra.mxu0 0
      %1870 = vmatprep.subr.bf16.mxu0 0
      %1871 = vmatpush1.bf16.xpose.msra.mxu0 0
      %1872 = vmatprep.subr.bf16.mxu0 0
      %1873 = vmatpush1.bf16.xpose.msra.mxu0 %v1858
      %1874 = vmatprep.subr.bf16.mxu0 0
      %1875 = vmatpush1.bf16.xpose.msra.mxu0 %v1855
      %1876 = vmatprep.subr.bf16.mxu0 0
      %1877 = vmatpush2.bf16.xpose.msra.mxu0 0
      %1878 = vmatprep.subr.bf16.mxu0 0
      %1879 = vmatpush2.bf16.xpose.msra.mxu0 0
      %1880 = vmatprep.subr.bf16.mxu0 0
      %1881 = vmatpush2.bf16.xpose.msra.mxu0 0
      %1882 = vmatprep.subr.bf16.mxu0 0
      %1883 = vmatpush2.bf16.xpose.msra.mxu0 0
      %1884 = vmatprep.subr.bf16.mxu0 0
      %1885 = vmatpush2.bf16.xpose.msra.mxu0 0
      %1886 = vmatprep.subr.bf16.mxu0 0
      %1887 = vmatpush2.bf16.xpose.msra.mxu0 0
      %1888 = vmatprep.subr.bf16.mxu0 0
      %1889 = vmatpush2.bf16.xpose.msra.mxu0 0
      %1890 = vmatprep.subr.bf16.mxu0 0
      %1891 = vmatpush2.bf16.xpose.msra.mxu0 0
      %1892 = vmatprep.mubr.bf16.mxu0 0
      %1893 = vmatmul.mubr.bf16.gmra.mxu0 %v1852
      %v1894 = vpop.f32.mrf.mxu0
      %v1895 = vadd.f32 0.0, %v1894
      %v1896 = vpop.f32.mrf.mxu0
      %v1897 = vpop.f32.mrf.mxu0
      %v1898 = vadd.f32 0.0, %v1897
      %v1899 = vpop.f32.mrf.mxu0
      %1900 = vdwg.mxu0
      %v1901 = vadd.f32 %v1717, %v1895
      %v1902 = vadd.f32 %v1718, %v1898
      %1903 = vrot.lane.b32.xlu0 %v603, 100
      %v1904 = vpop.permute.xlu0 %1903
      %1905 = vrot.lane.b32.xlu0 %v603, 68
      %v1906 = vpop.permute.xlu0 %1905
      %v1908 = vsel %vm607, %v1904, 0
      %v1911 = vsel %vm607, %v1906, 0
      %1913 = vmatprep.subr.bf16.mxu0 0
      %1914 = vmatpush1.bf16.xpose.msra.mxu0 0
      %1915 = vmatprep.subr.bf16.mxu0 0
      %1916 = vmatpush1.bf16.xpose.msra.mxu0 0
      %1917 = vmatprep.subr.bf16.mxu0 0
      %1918 = vmatpush1.bf16.xpose.msra.mxu0 0
      %1919 = vmatprep.subr.bf16.mxu0 0
      %1920 = vmatpush1.bf16.xpose.msra.mxu0 0
      %1921 = vmatprep.subr.bf16.mxu0 0
      %1922 = vmatpush1.bf16.xpose.msra.mxu0 0
      %1923 = vmatprep.subr.bf16.mxu0 0
      %1924 = vmatpush1.bf16.xpose.msra.mxu0 0
      %1925 = vmatprep.subr.bf16.mxu0 0
      %1926 = vmatpush1.bf16.xpose.msra.mxu0 0
      %1927 = vmatprep.subr.bf16.mxu0 0
      %1928 = vmatpush1.bf16.xpose.msra.mxu0 %v1911
      %1929 = vmatprep.subr.bf16.mxu0 0
      %1930 = vmatpush2.bf16.xpose.msra.mxu0 0
      %1931 = vmatprep.subr.bf16.mxu0 0
      %1932 = vmatpush2.bf16.xpose.msra.mxu0 0
      %1933 = vmatprep.subr.bf16.mxu0 0
      %1934 = vmatpush2.bf16.xpose.msra.mxu0 0
      %1935 = vmatprep.subr.bf16.mxu0 0
      %1936 = vmatpush2.bf16.xpose.msra.mxu0 0
      %1937 = vmatprep.subr.bf16.mxu0 0
      %1938 = vmatpush2.bf16.xpose.msra.mxu0 0
      %1939 = vmatprep.subr.bf16.mxu0 0
      %1940 = vmatpush2.bf16.xpose.msra.mxu0 0
      %1941 = vmatprep.subr.bf16.mxu0 0
      %1942 = vmatpush2.bf16.xpose.msra.mxu0 0
      %1943 = vmatprep.subr.bf16.mxu0 0
      %1944 = vmatpush2.bf16.xpose.msra.mxu0 0
      %1945 = vmatprep.mubr.bf16.mxu0 0
      %1946 = vmatmul.mubr.bf16.gmra.mxu0 %v1908
      %v1947 = vpop.f32.mrf.mxu0
      %v1948 = vadd.f32 0.0, %v1947
      %v1949 = vpop.f32.mrf.mxu0
      %v1950 = vpop.f32.mrf.mxu0
      %v1951 = vadd.f32 0.0, %v1950
      %v1952 = vpop.f32.mrf.mxu0
      %1953 = vdwg.mxu0
      %v1954 = vmul.f32 %v1948, 0.5
      %v1955 = vmul.f32 %v1951, 0.5
      %v1956 = vadd.f32 %v1954, %v661
      %v1957 = vadd.f32 %v1955, %v661
      %v1958 = vsel %vm665, %v1956, -inf
      %1959 = vmax.xlane.f32.xlu0 %v1958
      %v1960 = vpop.xlane.xlu0 %1959
      %v1961 = vsel %vm669, %v1957, -inf
      %1962 = vmax.xlane.f32.xlu0 %v1961
      %v1963 = vpop.xlane.xlu0 %1962
      %v1964 = vsub.f32 %v1956, %v1960
      %v1965 = vsub.f32 %v1957, %v1963
      %v1966 = vmul.f32 %v1964, 1.442695
      %v1967 = vpow.pop %v1966
      %v1968 = vmul.f32 %v1965, 1.442695
      %v1969 = vpow.pop %v1968
      %v1970 = vsel %vm665, %v1967, 0.0
      %1971 = vadd.xlane.f32.xlu0 %v1970
      %v1972 = vpop.xlane.xlu0 %1971
      %v1973 = vsel %vm669, %v1969, 0.0
      %1974 = vadd.xlane.f32.xlu0 %v1973
      %v1975 = vpop.xlane.xlu0 %1974
      %v1976 = vrcp.pop %v1972
      %v1977 = vrcp.pop %v1975
      %v1978 = vmul.f32 %v1967, %v1976
      %v1979 = vmul.f32 %v1969, %v1977
      %v1980 = vpack.c.bf16 %v1979, %v1978
      %1981 = vrot.lane.b32.xlu0 %v603, 36
      %v1982 = vpop.permute.xlu0 %1981
      %v1984 = vsel %vm665, %v1980, 0
      %v1987 = vsel %vm695, %v1982, 0
      %1989 = vmatprep.subr.bf16.mxu0 0
      %1990 = vmatpush1.bf16.msra.mxu0 0
      %1991 = vmatprep.subr.bf16.mxu0 0
      %1992 = vmatpush1.bf16.msra.mxu0 0
      %1993 = vmatprep.subr.bf16.mxu0 0
      %1994 = vmatpush1.bf16.msra.mxu0 0
      %1995 = vmatprep.subr.bf16.mxu0 0
      %1996 = vmatpush1.bf16.msra.mxu0 0
      %1997 = vmatprep.subr.bf16.mxu0 0
      %1998 = vmatpush1.bf16.msra.mxu0 0
      %1999 = vmatprep.subr.bf16.mxu0 0
      %2000 = vmatpush1.bf16.msra.mxu0 0
      %2001 = vmatprep.subr.bf16.mxu0 0
      %2002 = vmatpush1.bf16.msra.mxu0 0
      %2003 = vmatprep.subr.bf16.mxu0 0
      %2004 = vmatpush1.bf16.msra.mxu0 %v1987
      %2005 = vmatprep.subr.bf16.mxu0 0
      %2006 = vmatpush2.bf16.msra.mxu0 0
      %2007 = vmatprep.subr.bf16.mxu0 0
      %2008 = vmatpush2.bf16.msra.mxu0 0
      %2009 = vmatprep.subr.bf16.mxu0 0
      %2010 = vmatpush2.bf16.msra.mxu0 0
      %2011 = vmatprep.subr.bf16.mxu0 0
      %2012 = vmatpush2.bf16.msra.mxu0 0
      %2013 = vmatprep.subr.bf16.mxu0 0
      %2014 = vmatpush2.bf16.msra.mxu0 0
      %2015 = vmatprep.subr.bf16.mxu0 0
      %2016 = vmatpush2.bf16.msra.mxu0 0
      %2017 = vmatprep.subr.bf16.mxu0 0
      %2018 = vmatpush2.bf16.msra.mxu0 0
      %2019 = vmatprep.subr.bf16.mxu0 0
      %2020 = vmatpush2.bf16.msra.mxu0 0
      %2021 = vmatprep.mubr.bf16.mxu0 0
      %2022 = vmatmul.mubr.bf16.gmra.mxu0 %v1984
      %v2023 = vpop.f32.mrf.mxu0
      %v2024 = vadd.f32 0.0, %v2023
      %v2025 = vpop.f32.mrf.mxu0
      %v2026 = vpop.f32.mrf.mxu0
      %v2027 = vadd.f32 0.0, %v2026
      %v2028 = vpop.f32.mrf.mxu0
      %2029 = vdwg.mxu0
      %v2030 = vpack.c.bf16 %v2027, %v2024
      %2031 = vrot.lane.b32.xlu0 %v877, 100
      %v2032 = vpop.permute.xlu0 %2031
      %2033 = vrot.lane.b32.xlu0 %v878, 100
      %v2034 = vpop.permute.xlu0 %2033
      %v2036 = vsel %vm607, %v2030, 0
      %v2039 = vsel %vm607, %v2032, 0
      %v2042 = vsel %vm607, %v2034, 0
      %2044 = vmatprep.subr.bf16.mxu0 0
      %2045 = vmatpush1.bf16.xpose.msra.mxu0 0
      %2046 = vmatprep.subr.bf16.mxu0 0
      %2047 = vmatpush1.bf16.xpose.msra.mxu0 0
      %2048 = vmatprep.subr.bf16.mxu0 0
      %2049 = vmatpush1.bf16.xpose.msra.mxu0 0
      %2050 = vmatprep.subr.bf16.mxu0 0
      %2051 = vmatpush1.bf16.xpose.msra.mxu0 0
      %2052 = vmatprep.subr.bf16.mxu0 0
      %2053 = vmatpush1.bf16.xpose.msra.mxu0 0
      %2054 = vmatprep.subr.bf16.mxu0 0
      %2055 = vmatpush1.bf16.xpose.msra.mxu0 0
      %2056 = vmatprep.subr.bf16.mxu0 0
      %2057 = vmatpush1.bf16.xpose.msra.mxu0 %v2042
      %2058 = vmatprep.subr.bf16.mxu0 0
      %2059 = vmatpush1.bf16.xpose.msra.mxu0 %v2039
      %2060 = vmatprep.subr.bf16.mxu0 0
      %2061 = vmatpush2.bf16.xpose.msra.mxu0 0
      %2062 = vmatprep.subr.bf16.mxu0 0
      %2063 = vmatpush2.bf16.xpose.msra.mxu0 0
      %2064 = vmatprep.subr.bf16.mxu0 0
      %2065 = vmatpush2.bf16.xpose.msra.mxu0 0
      %2066 = vmatprep.subr.bf16.mxu0 0
      %2067 = vmatpush2.bf16.xpose.msra.mxu0 0
      %2068 = vmatprep.subr.bf16.mxu0 0
      %2069 = vmatpush2.bf16.xpose.msra.mxu0 0
      %2070 = vmatprep.subr.bf16.mxu0 0
      %2071 = vmatpush2.bf16.xpose.msra.mxu0 0
      %2072 = vmatprep.subr.bf16.mxu0 0
      %2073 = vmatpush2.bf16.xpose.msra.mxu0 0
      %2074 = vmatprep.subr.bf16.mxu0 0
      %2075 = vmatpush2.bf16.xpose.msra.mxu0 0
      %2076 = vmatprep.mubr.bf16.mxu0 0
      %2077 = vmatmul.mubr.bf16.gmra.mxu0 %v2036
      %v2078 = vpop.f32.mrf.mxu0
      %v2079 = vadd.f32 0.0, %v2078
      %v2080 = vpop.f32.mrf.mxu0
      %v2081 = vpop.f32.mrf.mxu0
      %v2082 = vadd.f32 0.0, %v2081
      %v2083 = vpop.f32.mrf.mxu0
      %2084 = vdwg.mxu0
      %v2085 = vadd.f32 %v1901, %v2079
      %v2086 = vadd.f32 %v1902, %v2082
      %v2087 = vld [vmem:[%s5] sm:$0x1]
      %v2089 = vlaneseq
      %v2090 = vshrl.u32 %v2089, 7
      %v2091 = vsub.s32 0, %v2090
      %v2092 = vrot.slane %v2087, %v2091
      %v2094 = vadd.f32 %v2085, %v2092
      %v2095 = vadd.f32 %v2086, %v2092
      %v2096 = vadd.f32 %v483, %v2094
      %v2097 = vadd.f32 %v484, %v2095
      %v2098 = vsel %vm535, %v2096, 0.0
      %2099 = vadd.xlane.f32.xlu0 %v2098
      %v2100 = vpop.xlane.xlu0 %2099
      %vm2101 = vcmask 257024
      %v2102 = vsel %vm2101, %v2097, 0.0
      %2103 = vadd.xlane.f32.xlu0 %v2102
      %v2104 = vpop.xlane.xlu0 %2103
      %v2105 = vrcp.pop 32.0
      %v2106 = vmul.f32 %v2100, %v2105
      %v2107 = vmul.f32 %v2104, %v2105
      %v2108 = vsub.f32 %v2096, %v2106
      %v2109 = vsub.f32 %v2097, %v2107
      %v2110 = vmul.f32 %v2108, %v2108
      %v2111 = vmul.f32 %v2109, %v2109
      %v2112 = vsel %vm535, %v2110, 0.0
      %2113 = vadd.xlane.f32.xlu0 %v2112
      %v2114 = vpop.xlane.xlu0 %2113
      %v2115 = vsel %vm2101, %v2111, 0.0
      %2116 = vadd.xlane.f32.xlu0 %v2115
      %v2117 = vpop.xlane.xlu0 %2116
      %v2118 = vmul.f32 %v2114, %v2105
      %v2119 = vmul.f32 %v2117, %v2105
      %v2120 = vadd.f32 %v2118, 1e-05
      %v2121 = vadd.f32 %v2119, 1e-05
      %v2122 = vrsqrt.pop %v2120
      %v2123 = vrsqrt.pop %v2121
      %v2124 = vmul.f32 %v2108, %v2122
      %v2125 = vmul.f32 %v2109, %v2123
      %v2126 = vld [vmem:[%s6] sm:$0x1]
      %v2128 = vlaneseq
      %v2129 = vshrl.u32 %v2128, 7
      %v2130 = vsub.s32 0, %v2129
      %v2131 = vrot.slane %v2126, %v2130
      %v2133 = vmul.f32 %v2124, %v2131
      %v2134 = vmul.f32 %v2125, %v2131
      %v2135 = vld [vmem:[%s7] sm:$0x1]
      %v2137 = vlaneseq
      %v2138 = vshrl.u32 %v2137, 7
      %v2139 = vsub.s32 0, %v2138
      %v2140 = vrot.slane %v2135, %v2139
      %v2142 = vadd.f32 %v2133, %v2140
      %v2143 = vadd.f32 %v2134, %v2140
      %v2144 = vpack.c.bf16 %v2143, %v2142
      %v2145 = vld [vmem:[%s8] sm:$0xf]
      %v2146 = vld [vmem:[%s8 + $0x4] sm:$0xf]
      %v2147 = vld [vmem:[%s8 + $0x8] sm:$0xf]
      %v2148 = vld [vmem:[%s8 + $0xc] sm:$0xf]
      %v2149 = vld [vmem:[%s8 + $0x10] sm:$0xf]
      %v2150 = vld [vmem:[%s8 + $0x14] sm:$0xf]
      %v2151 = vld [vmem:[%s8 + $0x18] sm:$0xf]
      %v2152 = vld [vmem:[%s8 + $0x1c] sm:$0xf]
      %v2153 = vld [vmem:[%s8 + $0x20] sm:$0xf]
      %v2154 = vld [vmem:[%s8 + $0x24] sm:$0xf]
      %v2155 = vld [vmem:[%s8 + $0x28] sm:$0xf]
      %v2156 = vld [vmem:[%s8 + $0x2c] sm:$0xf]
      %v2157 = vld [vmem:[%s8 + $0x30] sm:$0xf]
      %v2158 = vld [vmem:[%s8 + $0x34] sm:$0xf]
      %v2159 = vld [vmem:[%s8 + $0x38] sm:$0xf]
      %v2160 = vld [vmem:[%s8 + $0x3c] sm:$0xf]
      %v2161 = vld [vmem:[%s9] sm:$0x1]
      %v2163 = vlaneseq
      %v2164 = vshrl.u32 %v2163, 7
      %v2165 = vsub.s32 0, %v2164
      %v2166 = vrot.slane %v2161, %v2165
      %v2184 = vunpack.c.l.b16 %v2145
      %v2185 = vunpack.c.l.b16 %v2146
      %v2186 = vunpack.c.l.b16 %v2147
      %v2187 = vunpack.c.l.b16 %v2148
      %v2188 = vunpack.c.l.b16 %v2149
      %v2189 = vunpack.c.l.b16 %v2150
      %v2190 = vunpack.c.l.b16 %v2151
      %v2191 = vunpack.c.l.b16 %v2152
      %v2192 = vunpack.c.l.b16 %v2153
      %v2193 = vunpack.c.l.b16 %v2154
      %v2194 = vunpack.c.l.b16 %v2155
      %v2195 = vunpack.c.l.b16 %v2156
      %v2196 = vunpack.c.l.b16 %v2157
      %v2197 = vunpack.c.l.b16 %v2158
      %v2198 = vunpack.c.l.b16 %v2159
      %v2199 = vunpack.c.l.b16 %v2160
      %v2200 = vpack.c.b16 %v2185, %v2184
      %v2201 = vpack.c.b16 %v2187, %v2186
      %v2202 = vpack.c.b16 %v2189, %v2188
      %v2203 = vpack.c.b16 %v2191, %v2190
      %v2204 = vpack.c.b16 %v2193, %v2192
      %v2205 = vpack.c.b16 %v2195, %v2194
      %v2206 = vpack.c.b16 %v2197, %v2196
      %v2207 = vpack.c.b16 %v2199, %v2198
      %v2209 = vsel %vm535, %v2144, 0
      %v2212 = vsel %vm535, %v2200, 0
      %v2215 = vsel %vm535, %v2201, 0
      %v2218 = vsel %vm535, %v2202, 0
      %v2221 = vsel %vm535, %v2203, 0
      %v2224 = vsel %vm535, %v2204, 0
      %v2227 = vsel %vm535, %v2205, 0
      %v2230 = vsel %vm535, %v2206, 0
      %v2233 = vsel %vm535, %v2207, 0
      %2235 = vmatprep.subr.bf16.mxu0 0
      %2236 = vmatpush1.bf16.xpose.msra.mxu0 %v2233
      %2237 = vmatprep.subr.bf16.mxu0 0
      %2238 = vmatpush1.bf16.xpose.msra.mxu0 %v2230
      %2239 = vmatprep.subr.bf16.mxu0 0
      %2240 = vmatpush1.bf16.xpose.msra.mxu0 %v2227
      %2241 = vmatprep.subr.bf16.mxu0 0
      %2242 = vmatpush1.bf16.xpose.msra.mxu0 %v2224
      %2243 = vmatprep.subr.bf16.mxu0 0
      %2244 = vmatpush1.bf16.xpose.msra.mxu0 %v2221
      %2245 = vmatprep.subr.bf16.mxu0 0
      %2246 = vmatpush1.bf16.xpose.msra.mxu0 %v2218
      %2247 = vmatprep.subr.bf16.mxu0 0
      %2248 = vmatpush1.bf16.xpose.msra.mxu0 %v2215
      %2249 = vmatprep.subr.bf16.mxu0 0
      %2250 = vmatpush1.bf16.xpose.msra.mxu0 %v2212
      %2251 = vmatprep.subr.bf16.mxu0 0
      %2252 = vmatpush2.bf16.xpose.msra.mxu0 0
      %2253 = vmatprep.subr.bf16.mxu0 0
      %2254 = vmatpush2.bf16.xpose.msra.mxu0 0
      %2255 = vmatprep.subr.bf16.mxu0 0
      %2256 = vmatpush2.bf16.xpose.msra.mxu0 0
      %2257 = vmatprep.subr.bf16.mxu0 0
      %2258 = vmatpush2.bf16.xpose.msra.mxu0 0
      %2259 = vmatprep.subr.bf16.mxu0 0
      %2260 = vmatpush2.bf16.xpose.msra.mxu0 0
      %2261 = vmatprep.subr.bf16.mxu0 0
      %2262 = vmatpush2.bf16.xpose.msra.mxu0 0
      %2263 = vmatprep.subr.bf16.mxu0 0
      %2264 = vmatpush2.bf16.xpose.msra.mxu0 0
      %2265 = vmatprep.subr.bf16.mxu0 0
      %2266 = vmatpush2.bf16.xpose.msra.mxu0 0
      %2267 = vmatprep.mubr.bf16.mxu0 0
      %2268 = vmatmul.mubr.bf16.gmra.mxu0 %v2209
      %v2269 = vpop.f32.mrf.mxu0
      %v2270 = vadd.f32 %v2166, %v2269
      %v2271 = vpop.f32.mrf.mxu0
      %v2272 = vpop.f32.mrf.mxu0
      %v2273 = vadd.f32 %v2166, %v2272
      %v2274 = vpop.f32.mrf.mxu0
      %2275 = vdwg.mxu0
      %v2276 = vmax.f32 %v2270, 0.0
      %v2277 = vmax.f32 %v2273, 0.0
      %v2278 = vpack.c.bf16 %v2277, %v2276
      %v2279 = vld [vmem:[%s10] sm:$0xf]
      %v2280 = vld [vmem:[%s10 + $0x4] sm:$0xf]
      %v2281 = vld [vmem:[%s10 + $0x8] sm:$0xf]
      %v2282 = vld [vmem:[%s10 + $0xc] sm:$0xf]
      %v2283 = vld [vmem:[%s11] sm:$0x1]
      %v2285 = vlaneseq
      %v2286 = vshrl.u32 %v2285, 7
      %v2287 = vsub.s32 0, %v2286
      %v2288 = vrot.slane %v2283, %v2287
      %v2294 = vunpack.c.l.b16 %v2279
      %v2295 = vunpack.c.l.b16 %v2280
      %v2296 = vunpack.c.l.b16 %v2281
      %v2297 = vunpack.c.l.b16 %v2282
      %v2298 = vpack.c.b16 %v2295, %v2294
      %v2299 = vpack.c.b16 %v2297, %v2296
      %2302 = vmatprep.subr.bf16.mxu0 0
      %2303 = vmatpush1.bf16.xpose.msra.mxu0 0
      %2304 = vmatprep.subr.bf16.mxu0 0
      %2305 = vmatpush1.bf16.xpose.msra.mxu0 0
      %2306 = vmatprep.subr.bf16.mxu0 0
      %2307 = vmatpush1.bf16.xpose.msra.mxu0 0
      %2308 = vmatprep.subr.bf16.mxu0 0
      %2309 = vmatpush1.bf16.xpose.msra.mxu0 0
      %2310 = vmatprep.subr.bf16.mxu0 0
      %2311 = vmatpush1.bf16.xpose.msra.mxu0 0
      %2312 = vmatprep.subr.bf16.mxu0 0
      %2313 = vmatpush1.bf16.xpose.msra.mxu0 0
      %2314 = vmatprep.subr.bf16.mxu0 0
      %2315 = vmatpush1.bf16.xpose.msra.mxu0 %v2299
      %2316 = vmatprep.subr.bf16.mxu0 0
      %2317 = vmatpush1.bf16.xpose.msra.mxu0 %v2298
      %2318 = vmatprep.subr.bf16.mxu0 0
      %2319 = vmatpush2.bf16.xpose.msra.mxu0 0
      %2320 = vmatprep.subr.bf16.mxu0 0
      %2321 = vmatpush2.bf16.xpose.msra.mxu0 0
      %2322 = vmatprep.subr.bf16.mxu0 0
      %2323 = vmatpush2.bf16.xpose.msra.mxu0 0
      %2324 = vmatprep.subr.bf16.mxu0 0
      %2325 = vmatpush2.bf16.xpose.msra.mxu0 0
      %2326 = vmatprep.subr.bf16.mxu0 0
      %2327 = vmatpush2.bf16.xpose.msra.mxu0 0
      %2328 = vmatprep.subr.bf16.mxu0 0
      %2329 = vmatpush2.bf16.xpose.msra.mxu0 0
      %2330 = vmatprep.subr.bf16.mxu0 0
      %2331 = vmatpush2.bf16.xpose.msra.mxu0 0
      %2332 = vmatprep.subr.bf16.mxu0 0
      %2333 = vmatpush2.bf16.xpose.msra.mxu0 0
      %2334 = vmatprep.mubr.bf16.mxu0 0
      %2335 = vmatmul.mubr.bf16.gmra.mxu0 %v2278
      %v2336 = vpop.f32.mrf.mxu0
      %v2337 = vadd.f32 %v2288, %v2336
      %v2338 = vpop.f32.mrf.mxu0
      %v2339 = vpop.f32.mrf.mxu0
      %v2340 = vadd.f32 %v2288, %v2339
      %v2341 = vpop.f32.mrf.mxu0
      %2342 = vdwg.mxu0
      %v2343 = vadd.f32 %v2142, %v2337
      %v2344 = vadd.f32 %v2143, %v2340
      %v2345 = vsel %vm535, %v2343, 0.0
      %2346 = vadd.xlane.f32.xlu0 %v2345
      %v2347 = vpop.xlane.xlu0 %2346
      %v2348 = vsel %vm2101, %v2344, 0.0
      %2349 = vadd.xlane.f32.xlu0 %v2348
      %v2350 = vpop.xlane.xlu0 %2349
      %v2351 = vmul.f32 %v2347, %v2105
      %v2352 = vmul.f32 %v2350, %v2105
      %v2353 = vsub.f32 %v2343, %v2351
      %v2354 = vsub.f32 %v2344, %v2352
      %v2355 = vmul.f32 %v2353, %v2353
      %v2356 = vmul.f32 %v2354, %v2354
      %v2357 = vsel %vm535, %v2355, 0.0
      %2358 = vadd.xlane.f32.xlu0 %v2357
      %v2359 = vpop.xlane.xlu0 %2358
      %v2360 = vsel %vm2101, %v2356, 0.0
      %2361 = vadd.xlane.f32.xlu0 %v2360
      %v2362 = vpop.xlane.xlu0 %2361
      %v2363 = vmul.f32 %v2359, %v2105
      %v2364 = vmul.f32 %v2362, %v2105
      %v2365 = vadd.f32 %v2363, 1e-05
      %v2366 = vadd.f32 %v2364, 1e-05
      %v2367 = vrsqrt.pop %v2365
      %v2368 = vrsqrt.pop %v2366
      %v2369 = vmul.f32 %v2353, %v2367
      %v2370 = vmul.f32 %v2354, %v2368
      %v2371 = vld [vmem:[%s12] sm:$0x1]
      %v2373 = vlaneseq
      %v2374 = vshrl.u32 %v2373, 7
      %v2375 = vsub.s32 0, %v2374
      %v2376 = vrot.slane %v2371, %v2375
      %v2378 = vmul.f32 %v2369, %v2376
      %v2379 = vmul.f32 %v2370, %v2376
      %v2380 = vld [vmem:[%s13] sm:$0x1]
      %v2382 = vlaneseq
      %v2383 = vshrl.u32 %v2382, 7
      %v2384 = vsub.s32 0, %v2383
      %v2385 = vrot.slane %v2380, %v2384
      %v2387 = vadd.f32 %v2378, %v2385
      %v2388 = vadd.f32 %v2379, %v2385
      %2389 = vst.msk [vmem:[%s481] sm:$0xff] %vm535, %v2387
      %2390 = vst.msk [vmem:[%s481 + $0x8] sm:$0xf] %vm2101, %v2388
      %p2391 = scmp.lt.s32.totalorder %s25, 1
      %s2392 = scalar_select %p2391, %s25, 1
      %s2393 = smul.addr %s2392, 2
      %s2394 = smul.addr %s2393, 8
      %s2395 = scalar_lea.vmem %s14, %s2394
      // Predicated region
      $region77: #{attn2_forward.2} parent=75 // pred_check
        %p2396 = pneg %p347
      $region78: #{attn2_forward.2} parent=75 // pred_check_branch
        %2398 = sbr.rel (%p2396) target = $region80
      $region79: #{attn2_forward.2} parent=75 // pred_region
        _
      $region80: #{attn2_forward.2} parent=75 // pred_fallthru
        _
    $region76: #{attn2_forward.2} parent=5 // pred_fallthru
      _
    %p2399 = scmp.le.s32.totalorder 2, %s20
    // Predicated region
    $region81: #{attn2_forward.2} parent=5 // pred_check
      %p2400 = pneg %p2399
    $region82: #{attn2_forward.2} parent=5 // pred_check_branch
      %2402 = sbr.rel (%p2400) target = $region84
    $region83: #{attn2_forward.2} parent=5 // pred_region
      %s2403 = ssub.s32 %s20, 2
      // Predicated region
      $region85: #{attn2_forward.2} parent=83 // pred_check
        %p2404 = pneg %p353
      $region86: #{attn2_forward.2} parent=83 // pred_check_branch
        %2406 = sbr.rel (%p2404) target = $region88
      $region87: #{attn2_forward.2} parent=83 // pred_region
        %p2407 = scmp.lt.s32.totalorder %s26, 1
        %s2408 = scalar_select %p2407, %s26, 1
        %s2409 = smul.addr %s2408, 2
        %s2410 = smul.addr %s2409, 8
        %s2411 = scalar_lea.vmem %s14, %s2410
      $region88: #{attn2_forward.2} parent=83 // pred_fallthru
        _
    $region84: #{attn2_forward.2} parent=5 // pred_fallthru
      _
  $region6: #{attn2_forward.2} parent=0 // loop_footer
    %s24 = sadd.s32 1, %s20
  $region7: #{attn2_forward.2} parent=0 // loop_footer_branch
    %19 = sbr.rel target = $region3
  $region8: #{attn2_forward.2} parent=0 // loop_exit
    _

</llo_original>
